<compile_context>
chip_gen: v7x
topology: tpu7x:2x2x1
jax: 0.10.0
libtpu: 0.0.40
codegen_flags: <defaults>
</compile_context>

<pallas_src>
import functools
import math

import jax
import jax.numpy as jnp
from jax import lax
from jax.experimental import pallas as pl
from jax.experimental.pallas import tpu as pltpu


def self_attention_kernel(x_ref, wq_ref, wk_ref, wv_ref,
                          bq_ref, bk_ref, bv_ref, o_ref, *, nh, d):
    """One batch element per grid step.

    x_ref: [S, H]   wq/wk/wv_ref: [H, H]   bq/bk/bv_ref: [1, H]   o_ref: [S, H]
    The 1/sqrt(D) scale is already folded into wq/bq by prepare_params.
    """
    x = x_ref[...]                                                   # [S, H]
    s = x.shape[0]

    q = jnp.dot(x, wq_ref[...], preferred_element_type=jnp.float32) + bq_ref[...]
    k = jnp.dot(x, wk_ref[...], preferred_element_type=jnp.float32) + bk_ref[...]
    v = jnp.dot(x, wv_ref[...], preferred_element_type=jnp.float32) + bv_ref[...]

    # One relayout per tensor: [S, H] -> [NH, S, D] (heads become a batch dim).
    qh = q.reshape(s, nh, d).transpose(1, 0, 2)                      # [NH, S, D]
    kh = k.reshape(s, nh, d).transpose(1, 0, 2)
    vh = v.reshape(s, nh, d).transpose(1, 0, 2)

    # scores[h] = qh[h] @ kh[h]^T : head-batched matmul, no materialized k.T.
    scores = lax.dot_general(
        qh, kh,
        dimension_numbers=(((2,), (2,)), ((0,), (0,))),
        preferred_element_type=jnp.float32)                          # [NH, S, S]

    # Softmax over keys (f32, exact divide for parity with the reference).
    scores = scores - jnp.max(scores, axis=-1, keepdims=True)
    p = jnp.exp(scores)
    p = p / jnp.sum(p, axis=-1, keepdims=True)

    # ctx[h] = p[h] @ vh[h] : head-batched matmul.
    ctx = lax.dot_general(
        p, vh,
        dimension_numbers=(((2,), (1,)), ((0,), (0,))),
        preferred_element_type=jnp.float32)                          # [NH, S, D]

    # Back to [S, H] and a single lane-dense store of the whole tile.
    ctx = ctx.transpose(1, 0, 2).reshape(s, nh * d)
    o_ref[...] = jnp.tanh(ctx).astype(o_ref.dtype)


def prepare_params(wq, wk, wv, bq, bk, bv, num_heads):
    """One-time parameter prep: fold 1/sqrt(head_dim) into the Q projection
    and reshape biases to [1, H]. Call once at init, not per forward."""
    h = wq.shape[0]
    d = h // num_heads
    scale = 1.0 / math.sqrt(d)
    return (wq * scale, wk, wv,
            (bq * scale).reshape(1, h),
            bk.reshape(1, h),
            bv.reshape(1, h))


def self_attention(x, params, num_heads):
    """x: [B, S, H] float32. params: output of prepare_params."""
    wq, wk, wv, bq, bk, bv = params
    b, s, h = x.shape
    d = h // num_heads

    kernel = functools.partial(self_attention_kernel, nh=num_heads, d=d)

    # Weights/biases use a constant index_map -> stay resident in VMEM across
    # the batch grid; only x / out are streamed per grid step.
    weight_spec = pl.BlockSpec((h, h), lambda i: (0, 0))
    bias_spec = pl.BlockSpec((1, h), lambda i: (0, 0))

    return pl.pallas_call(
        kernel,
        out_shape=jax.ShapeDtypeStruct((b, s, h), x.dtype),
        grid=(b,),
        in_specs=[
            pl.BlockSpec((None, s, h), lambda i: (i, 0, 0)),   # x, per-batch tile
            weight_spec, weight_spec, weight_spec,             # Wq, Wk, Wv
            bias_spec, bias_spec, bias_spec,                   # bq, bk, bv
        ],
        out_specs=pl.BlockSpec((None, s, h), lambda i: (i, 0, 0)),
        compiler_params=pltpu.CompilerParams(
            dimension_semantics=("parallel",)),
    )(x, wq, wk, wv, bq, bk, bv)


def self_attention_ref(x, wq, wk, wv, bq, bk, bv, num_heads):
    """Plain-JAX reference mirroring BertSelfAttention + tanh."""
    b, s, h = x.shape
    d = h // num_heads
    scale = 1.0 / math.sqrt(d)

    q = x @ wq + bq
    k = x @ wk + bk
    v = x @ wv + bv

    def split(t):  # [B,S,H] -> [B,NH,S,D]
        return t.reshape(b, s, num_heads, d).transpose(0, 2, 1, 3)

    qh, kh, vh = split(q), split(k), split(v)
    scores = jnp.einsum("bhqd,bhkd->bhqk", qh, kh) * scale
    probs = jax.nn.softmax(scores, axis=-1)
    ctx = jnp.einsum("bhqk,bhkd->bhqd", probs, vh)
    ctx = ctx.transpose(0, 2, 1, 3).reshape(b, s, h)
    return jnp.tanh(ctx)


if __name__ == "__main__":
    # Small synthetic config consistent with BertSelfAttention's constraints
    # (hidden_size % num_attention_heads == 0).
    B, S, H, NH = 2, 8, 32, 4

    key = jax.random.PRNGKey(0)
    kx, kq, kk, kv, kbq, kbk, kbv = jax.random.split(key, 7)

    x = jax.random.normal(kx, (B, S, H), dtype=jnp.float32)
    # Deterministic synthetic parameters (Linear weights stored as [in, out]).
    wq = jax.random.normal(kq, (H, H), dtype=jnp.float32) * 0.05
    wk = jax.random.normal(kk, (H, H), dtype=jnp.float32) * 0.05
    wv = jax.random.normal(kv, (H, H), dtype=jnp.float32) * 0.05
    bq = jax.random.normal(kbq, (H,), dtype=jnp.float32) * 0.01
    bk = jax.random.normal(kbk, (H,), dtype=jnp.float32) * 0.01
    bv = jax.random.normal(kbv, (H,), dtype=jnp.float32) * 0.01

    params = prepare_params(wq, wk, wv, bq, bk, bv, NH)

    out = self_attention(x, params, NH)
    out = jax.block_until_ready(out)

    ref = self_attention_ref(x, wq, wk, wv, bq, bk, bv, NH)
    assert out.shape == (B, S, H) and out.dtype == jnp.float32
    assert jnp.allclose(out, ref, atol=1e-4, rtol=1e-4), "mismatch vs reference"

    print("KERNEL_OK")
</pallas_src>

<mosaic_0001>
module attributes {stable_mosaic.version = 11 : i64} {
  func.func @self_attention_kernel(%arg0: i32, %arg1: memref<1x8x32xf32, #tpu.memory_space<vmem>>, %arg2: memref<32x32xf32, #tpu.memory_space<vmem>>, %arg3: memref<32x32xf32, #tpu.memory_space<vmem>>, %arg4: memref<32x32xf32, #tpu.memory_space<vmem>>, %arg5: memref<1x32xf32, #tpu.memory_space<vmem>>, %arg6: memref<1x32xf32, #tpu.memory_space<vmem>>, %arg7: memref<1x32xf32, #tpu.memory_space<vmem>>, %arg8: memref<1x8x32xf32, #tpu.memory_space<vmem>>) attributes {dimension_semantics = [#tpu.dimension_semantics<parallel>], iteration_bounds = array<i64: 2>, scalar_prefetch = 0 : i64, scratch_operands = 0 : i64, tpu.core_type = #tpu.core_type<tc>, window_params = [{transform_indices = @transform_0, window_bounds = array<i64: 1, 8, 32>}, {pipeline_mode = #tpu.pipeline_mode<synchronous>, transform_indices = @transform_1, window_bounds = array<i64: 32, 32>}, {pipeline_mode = #tpu.pipeline_mode<synchronous>, transform_indices = @transform_2, window_bounds = array<i64: 32, 32>}, {pipeline_mode = #tpu.pipeline_mode<synchronous>, transform_indices = @transform_3, window_bounds = array<i64: 32, 32>}, {pipeline_mode = #tpu.pipeline_mode<synchronous>, transform_indices = @transform_4, window_bounds = array<i64: 1, 32>}, {pipeline_mode = #tpu.pipeline_mode<synchronous>, transform_indices = @transform_5, window_bounds = array<i64: 1, 32>}, {pipeline_mode = #tpu.pipeline_mode<synchronous>, transform_indices = @transform_6, window_bounds = array<i64: 1, 32>}, {transform_indices = @transform_7, window_bounds = array<i64: 1, 8, 32>}]} {
    %c0 = arith.constant 0 : index
    %c0_0 = arith.constant 0 : index
    %c0_1 = arith.constant 0 : index
    %0 = vector.load %arg1[%c0, %c0_0, %c0_1] : memref<1x8x32xf32, #tpu.memory_space<vmem>>, vector<1x8x32xf32>
    %1 = vector.shape_cast %0 : vector<1x8x32xf32> to vector<8x32xf32>
    %c0_2 = arith.constant 0 : index
    %c0_3 = arith.constant 0 : index
    %2 = vector.load %arg2[%c0_2, %c0_3] : memref<32x32xf32, #tpu.memory_space<vmem>>, vector<32x32xf32>
    %cst = arith.constant dense<0.000000e+00> : vector<8x32xf32>
    %3 = tpu.matmul %1, %2, %cst {dimension_numbers = #tpu.dot_dimension_numbers<[1], [0], [0], [1], [0, 0, 1, 1], [], []>} : vector<8x32xf32>, vector<32x32xf32>, vector<8x32xf32> -> vector<8x32xf32>
    %c0_4 = arith.constant 0 : index
    %c0_5 = arith.constant 0 : index
    %4 = vector.load %arg5[%c0_4, %c0_5] : memref<1x32xf32, #tpu.memory_space<vmem>>, vector<1x32xf32>
    %5 = vector.broadcast %4 : vector<1x32xf32> to vector<8x32xf32>
    %6 = arith.addf %3, %5 : vector<8x32xf32>
    %c0_6 = arith.constant 0 : index
    %c0_7 = arith.constant 0 : index
    %7 = vector.load %arg3[%c0_6, %c0_7] : memref<32x32xf32, #tpu.memory_space<vmem>>, vector<32x32xf32>
    %cst_8 = arith.constant dense<0.000000e+00> : vector<8x32xf32>
    %8 = tpu.matmul %1, %7, %cst_8 {dimension_numbers = #tpu.dot_dimension_numbers<[1], [0], [0], [1], [0, 0, 1, 1], [], []>} : vector<8x32xf32>, vector<32x32xf32>, vector<8x32xf32> -> vector<8x32xf32>
    %c0_9 = arith.constant 0 : index
    %c0_10 = arith.constant 0 : index
    %9 = vector.load %arg6[%c0_9, %c0_10] : memref<1x32xf32, #tpu.memory_space<vmem>>, vector<1x32xf32>
    %10 = vector.broadcast %9 : vector<1x32xf32> to vector<8x32xf32>
    %11 = arith.addf %8, %10 : vector<8x32xf32>
    %c0_11 = arith.constant 0 : index
    %c0_12 = arith.constant 0 : index
    %12 = vector.load %arg4[%c0_11, %c0_12] : memref<32x32xf32, #tpu.memory_space<vmem>>, vector<32x32xf32>
    %cst_13 = arith.constant dense<0.000000e+00> : vector<8x32xf32>
    %13 = tpu.matmul %1, %12, %cst_13 {dimension_numbers = #tpu.dot_dimension_numbers<[1], [0], [0], [1], [0, 0, 1, 1], [], []>} : vector<8x32xf32>, vector<32x32xf32>, vector<8x32xf32> -> vector<8x32xf32>
    %c0_14 = arith.constant 0 : index
    %c0_15 = arith.constant 0 : index
    %14 = vector.load %arg7[%c0_14, %c0_15] : memref<1x32xf32, #tpu.memory_space<vmem>>, vector<1x32xf32>
    %15 = vector.broadcast %14 : vector<1x32xf32> to vector<8x32xf32>
    %16 = arith.addf %13, %15 : vector<8x32xf32>
    %17 = vector.shape_cast %6 : vector<8x32xf32> to vector<8x4x8xf32>
    %18 = tpu.transpose %17, [1, 0, 2] : vector<8x4x8xf32> -> vector<4x8x8xf32>
    %19 = vector.shape_cast %11 : vector<8x32xf32> to vector<8x4x8xf32>
    %20 = tpu.transpose %19, [1, 0, 2] : vector<8x4x8xf32> -> vector<4x8x8xf32>
    %21 = vector.shape_cast %16 : vector<8x32xf32> to vector<8x4x8xf32>
    %22 = tpu.transpose %21, [1, 0, 2] : vector<8x4x8xf32> -> vector<4x8x8xf32>
    %cst_16 = arith.constant dense<0.000000e+00> : vector<4x8x8xf32>
    %23 = tpu.matmul %18, %20, %cst_16 {dimension_numbers = #tpu.dot_dimension_numbers<[2], [2], [1], [1], [0, 0, 0, 1, 1, 1], [0], [0]>} : vector<4x8x8xf32>, vector<4x8x8xf32>, vector<4x8x8xf32> -> vector<4x8x8xf32>
    %cst_17 = arith.constant dense<0xFF800000> : vector<4x8xf32>
    %24 = vector.multi_reduction <maximumf>, %23, %cst_17 [2] : vector<4x8x8xf32> to vector<4x8xf32>
    %25 = vector.shape_cast %24 : vector<4x8xf32> to vector<4x8x1xf32>
    %26 = vector.broadcast %25 : vector<4x8x1xf32> to vector<4x8x8xf32>
    %27 = arith.subf %23, %26 : vector<4x8x8xf32>
    %28 = math.exp %27 : vector<4x8x8xf32>
    %cst_18 = arith.constant dense<0.000000e+00> : vector<4x8xf32>
    %29 = vector.multi_reduction <add>, %28, %cst_18 [2] : vector<4x8x8xf32> to vector<4x8xf32>
    %30 = vector.shape_cast %29 : vector<4x8xf32> to vector<4x8x1xf32>
    %31 = vector.broadcast %30 : vector<4x8x1xf32> to vector<4x8x8xf32>
    %32 = arith.divf %28, %31 : vector<4x8x8xf32>
    %cst_19 = arith.constant dense<0.000000e+00> : vector<4x8x8xf32>
    %33 = tpu.matmul %32, %22, %cst_19 {dimension_numbers = #tpu.dot_dimension_numbers<[2], [1], [1], [2], [0, 0, 0, 1, 1, 2], [0], [0]>} : vector<4x8x8xf32>, vector<4x8x8xf32>, vector<4x8x8xf32> -> vector<4x8x8xf32>
    %34 = tpu.transpose %33, [1, 0, 2] : vector<4x8x8xf32> -> vector<8x4x8xf32>
    %35 = vector.shape_cast %34 : vector<8x4x8xf32> to vector<8x32xf32>
    %36 = math.tanh %35 : vector<8x32xf32>
    %c0_20 = arith.constant 0 : index
    %c0_21 = arith.constant 0 : index
    %c0_22 = arith.constant 0 : index
    %37 = vector.load %arg8[%c0_20, %c0_21, %c0_22] : memref<1x8x32xf32, #tpu.memory_space<vmem>>, vector<1x8x32xf32>
    %38 = vector.shape_cast %37 : vector<1x8x32xf32> to vector<8x32xf32>
    %39 = vector.shape_cast %36 : vector<8x32xf32> to vector<1x8x32xf32>
    tpu.vector_store %arg8[%c0_20, %c0_21, %c0_22], %39 {strides = array<i32>} : memref<1x8x32xf32, #tpu.memory_space<vmem>>, vector<1x8x32xf32>,
    return
  }
  func.func @transform_0(%arg0: i32) -> (i32, i32, i32) {
    %c0_i32 = arith.constant 0 : i32
    %c0_i32_0 = arith.constant 0 : i32
    %c0_i32_1 = arith.constant 0 : i32
    return %arg0, %c0_i32, %c0_i32_0 : i32, i32, i32
  }
  func.func @transform_1(%arg0: i32) -> (i32, i32) {
    %c0_i32 = arith.constant 0 : i32
    %c0_i32_0 = arith.constant 0 : i32
    %c0_i32_1 = arith.constant 0 : i32
    return %c0_i32, %c0_i32_0 : i32, i32
  }
  func.func @transform_2(%arg0: i32) -> (i32, i32) {
    %c0_i32 = arith.constant 0 : i32
    %c0_i32_0 = arith.constant 0 : i32
    %c0_i32_1 = arith.constant 0 : i32
    return %c0_i32, %c0_i32_0 : i32, i32
  }
  func.func @transform_3(%arg0: i32) -> (i32, i32) {
    %c0_i32 = arith.constant 0 : i32
    %c0_i32_0 = arith.constant 0 : i32
    %c0_i32_1 = arith.constant 0 : i32
    return %c0_i32, %c0_i32_0 : i32, i32
  }
  func.func @transform_4(%arg0: i32) -> (i32, i32) {
    %c0_i32 = arith.constant 0 : i32
    %c0_i32_0 = arith.constant 0 : i32
    %c0_i32_1 = arith.constant 0 : i32
    return %c0_i32, %c0_i32_0 : i32, i32
  }
  func.func @transform_5(%arg0: i32) -> (i32, i32) {
    %c0_i32 = arith.constant 0 : i32
    %c0_i32_0 = arith.constant 0 : i32
    %c0_i32_1 = arith.constant 0 : i32
    return %c0_i32, %c0_i32_0 : i32, i32
  }
  func.func @transform_6(%arg0: i32) -> (i32, i32) {
    %c0_i32 = arith.constant 0 : i32
    %c0_i32_0 = arith.constant 0 : i32
    %c0_i32_1 = arith.constant 0 : i32
    return %c0_i32, %c0_i32_0 : i32, i32
  }
  func.func @transform_7(%arg0: i32) -> (i32, i32, i32) {
    %c0_i32 = arith.constant 0 : i32
    %c0_i32_0 = arith.constant 0 : i32
    %c0_i32_1 = arith.constant 0 : i32
    return %arg0, %c0_i32, %c0_i32_0 : i32, i32, i32
  }
}

</mosaic_0001>

<llo_original>
// kernel: tpu_custom_call.1
$region0: #{tpu_custom_call.1}
  #allocation0 [shape = 'u32[]', space=smem, size = 0x4, offset = 0x4, fixed_abs, tag = 'smem constant byte address 0x4 - core index']
  #allocation1 [shape = 'u32[144,128]{1,0:T(1,128)}', space=vmem, size = 0x12000, scoped, tag = 'internal scratch']
  %s0 = inlined_call_operand.hbm [shape: f32[2,8,32], index: 0, kind: input, shape index: {}]
  %s1 = inlined_call_operand.hbm [shape: f32[32,32], index: 1, kind: input, shape index: {}]
  %s2 = inlined_call_operand.hbm [shape: f32[32,32], index: 2, kind: input, shape index: {}]
  %s3 = inlined_call_operand.hbm [shape: f32[32,32], index: 3, kind: input, shape index: {}]
  %s4 = inlined_call_operand.vmem [shape: f32[1,32], index: 4, kind: input, shape index: {}]
  %s5 = inlined_call_operand.vmem [shape: f32[1,32], index: 5, kind: input, shape index: {}]
  %s6 = inlined_call_operand.vmem [shape: f32[1,32], index: 6, kind: input, shape index: {}]
  %s7 = inlined_call_operand.hbm [shape: f32[2,8,32], index: 7, kind: output, shape index: {}]
  %s8 = sld [smem:[#allocation0]]
  $region77: #{tpu_custom_call.1} parent=0
    _
  %s10 = ssub.s32 1, %s8
  %s11 = scalar_select 0, %s10, %s8
  $region1: #{tpu_custom_call.1} parent=0
    #allocation2 [shape = 'u8[8192]{0}', space=vmem, size = 0x2000, scoped, tag = 'input window, operand 0']
    #allocation3 [shape = 's32[2]{0}', space=sflag, size = 0x8, scoped, tag = 'scoped memory for tpu_custom_call.1']
    #allocation4 [shape = 's32[2]{0}', space=sflag, size = 0x8, scoped, tag = 'scoped memory for tpu_custom_call.1']
    #allocation5 [shape = 'u8[16384]{0}', space=vmem, size = 0x4000, scoped, tag = 'input window, operand 1, single buffered']
    #allocation6 [shape = 's32[1]{0}', space=sflag, size = 0x4, scoped, tag = 'scoped memory for tpu_custom_call.1']
    #allocation7 [shape = 'u8[16384]{0}', space=vmem, size = 0x4000, scoped, tag = 'input window, operand 2, single buffered']
    #allocation8 [shape = 'u8[16384]{0}', space=vmem, size = 0x4000, scoped, tag = 'input window, operand 3, single buffered']
    #allocation9 [shape = 's32[1]{0}', space=sflag, size = 0x4, scoped, tag = 'scoped memory for tpu_custom_call.1']
    #allocation10 [shape = 'u8[8192]{0}', space=vmem, size = 0x2000, scoped, tag = 'output window, operand 0']
    %12 = vsyncpa [#allocation3], 0
    %s13 = scalar_lea.sflag [#allocation3], 1
    %14 = vsyncpa %s13, 0
    %15 = vsyncpa [#allocation6], 0
    %16 = vsyncpa [#allocation9], 0
    %17 = vsyncpa [#allocation4], 0
    %s18 = scalar_lea.sflag [#allocation4], 1
    %19 = vsyncpa %s18, 0
    loop: start=0, step=1, limit=4
    $region2: #{tpu_custom_call.1} parent=1 // loop_pre_header
      _
    $region3: #{tpu_custom_call.1} parent=1 // loop_header
      %s21 = sphi 0, %s25
      %p22 = scmp.ge.s32.totalorder %s21, 4
      %s31 = sphi 0, %s33
      %s34 = sphi 0, %s31
      %s35 = sphi 0, %s34
      %s51 = sphi 0, %s35
      %s55 = sphi 0, %s55
      %s57 = sphi 0, %s55
      %s58 = sphi 0, %s57
      %s72 = sphi 0, %s58
      %s76 = sphi 0, %s76
      %s78 = sphi 0, %s76
      %s79 = sphi 0, %s78
      %s93 = sphi 0, %s79
      %s97 = sphi 0, %s97
      %s99 = sphi 0, %s97
      %s100 = sphi 0, %s99
      %s114 = sphi 0, %s100
      %s118 = sphi 0, %s118
      %s120 = sphi 0, %s118
      %s121 = sphi 0, %s120
      %s135 = sphi 0, %s121
      %s139 = sphi 0, %s139
      %s141 = sphi 0, %s139
      %s142 = sphi 0, %s141
      %s156 = sphi 0, %s142
      %s160 = sphi 0, %s160
      %s162 = sphi 0, %s160
      %s163 = sphi 0, %s162
      %s177 = sphi 0, %s163
      %s183 = sphi 0, %s185
      %s186 = sphi 0, %s183
      %s187 = sphi 0, %s186
      %s203 = sphi 0, %s187
    $region4: #{tpu_custom_call.1} parent=1 // loop_header_branch
      %24 = sbr.rel (%p22) target = $region8
    $region5: #{tpu_custom_call.1} parent=1 // loop_body
      %s26 = ssub.s32 %s21, 1
      %s27 = ssub.s32 %s21, 2
      %s28 = sadd.s32 %s21, 1
      %s29 = ssub.s32 %s21, %s28
      %p30 = scmp.eq.s32.totalorder %s29, 0
      %s32 = sadd.s32 %s31, 1
      %s33 = scalar_select %p30, %s31, %s32
      %p36 = pneg %p30
      %p37 = scmp.eq.s32.totalorder %s21, 1
      %p38 = por %p36, %p37
      %p39 = scmp.ne.s32.totalorder %s31, %s34
      %p40 = scmp.eq.s32.totalorder %s21, 0
      %p41 = por %p39, %p40
      %p42 = scmp.ne.s32.totalorder %s31, %s34
      %p43 = scmp.eq.s32.totalorder %s26, 1
      %p44 = por %p42, %p43
      %p45 = scmp.ne.s32.totalorder %s34, %s35
      %p46 = scmp.eq.s32.totalorder %s26, 0
      %p47 = por %p45, %p46
      %p48 = scmp.ne.s32.totalorder %s34, %s35
      %p49 = scmp.eq.s32.totalorder %s27, 1
      %p50 = por %p48, %p49
      %p52 = scmp.ne.s32.totalorder %s35, %s51
      %p53 = scmp.eq.s32.totalorder %s27, 0
      %p54 = por %p52, %p53
      %s56 = sadd.s32 %s55, 1
      %p59 = scmp.eq.s32.totalorder %s21, 1
      %p60 = scmp.ne.s32.totalorder %s55, %s57
      %p61 = scmp.eq.s32.totalorder %s21, 0
      %p62 = por %p60, %p61
      %p63 = scmp.ne.s32.totalorder %s55, %s57
      %p64 = scmp.eq.s32.totalorder %s26, 1
      %p65 = por %p63, %p64
      %p66 = scmp.ne.s32.totalorder %s57, %s58
      %p67 = scmp.eq.s32.totalorder %s26, 0
      %p68 = por %p66, %p67
      %p69 = scmp.ne.s32.totalorder %s57, %s58
      %p70 = scmp.eq.s32.totalorder %s27, 1
      %p71 = por %p69, %p70
      %p73 = scmp.ne.s32.totalorder %s58, %s72
      %p74 = scmp.eq.s32.totalorder %s27, 0
      %p75 = por %p73, %p74
      %s77 = sadd.s32 %s76, 1
      %p80 = scmp.eq.s32.totalorder %s21, 1
      %p81 = scmp.ne.s32.totalorder %s76, %s78
      %p82 = scmp.eq.s32.totalorder %s21, 0
      %p83 = por %p81, %p82
      %p84 = scmp.ne.s32.totalorder %s76, %s78
      %p85 = scmp.eq.s32.totalorder %s26, 1
      %p86 = por %p84, %p85
      %p87 = scmp.ne.s32.totalorder %s78, %s79
      %p88 = scmp.eq.s32.totalorder %s26, 0
      %p89 = por %p87, %p88
      %p90 = scmp.ne.s32.totalorder %s78, %s79
      %p91 = scmp.eq.s32.totalorder %s27, 1
      %p92 = por %p90, %p91
      %p94 = scmp.ne.s32.totalorder %s79, %s93
      %p95 = scmp.eq.s32.totalorder %s27, 0
      %p96 = por %p94, %p95
      %s98 = sadd.s32 %s97, 1
      %p101 = scmp.eq.s32.totalorder %s21, 1
      %p102 = scmp.ne.s32.totalorder %s97, %s99
      %p103 = scmp.eq.s32.totalorder %s21, 0
      %p104 = por %p102, %p103
      %p105 = scmp.ne.s32.totalorder %s97, %s99
      %p106 = scmp.eq.s32.totalorder %s26, 1
      %p107 = por %p105, %p106
      %p108 = scmp.ne.s32.totalorder %s99, %s100
      %p109 = scmp.eq.s32.totalorder %s26, 0
      %p110 = por %p108, %p109
      %p111 = scmp.ne.s32.totalorder %s99, %s100
      %p112 = scmp.eq.s32.totalorder %s27, 1
      %p113 = por %p111, %p112
      %p115 = scmp.ne.s32.totalorder %s100, %s114
      %p116 = scmp.eq.s32.totalorder %s27, 0
      %p117 = por %p115, %p116
      %s119 = sadd.s32 %s118, 1
      %p122 = scmp.eq.s32.totalorder %s21, 1
      %p123 = scmp.ne.s32.totalorder %s118, %s120
      %p124 = scmp.eq.s32.totalorder %s21, 0
      %p125 = por %p123, %p124
      %p126 = scmp.ne.s32.totalorder %s118, %s120
      %p127 = scmp.eq.s32.totalorder %s26, 1
      %p128 = por %p126, %p127
      %p129 = scmp.ne.s32.totalorder %s120, %s121
      %p130 = scmp.eq.s32.totalorder %s26, 0
      %p131 = por %p129, %p130
      %p132 = scmp.ne.s32.totalorder %s120, %s121
      %p133 = scmp.eq.s32.totalorder %s27, 1
      %p134 = por %p132, %p133
      %p136 = scmp.ne.s32.totalorder %s121, %s135
      %p137 = scmp.eq.s32.totalorder %s27, 0
      %p138 = por %p136, %p137
      %s140 = sadd.s32 %s139, 1
      %p143 = scmp.eq.s32.totalorder %s21, 1
      %p144 = scmp.ne.s32.totalorder %s139, %s141
      %p145 = scmp.eq.s32.totalorder %s21, 0
      %p146 = por %p144, %p145
      %p147 = scmp.ne.s32.totalorder %s139, %s141
      %p148 = scmp.eq.s32.totalorder %s26, 1
      %p149 = por %p147, %p148
      %p150 = scmp.ne.s32.totalorder %s141, %s142
      %p151 = scmp.eq.s32.totalorder %s26, 0
      %p152 = por %p150, %p151
      %p153 = scmp.ne.s32.totalorder %s141, %s142
      %p154 = scmp.eq.s32.totalorder %s27, 1
      %p155 = por %p153, %p154
      %p157 = scmp.ne.s32.totalorder %s142, %s156
      %p158 = scmp.eq.s32.totalorder %s27, 0
      %p159 = por %p157, %p158
      %s161 = sadd.s32 %s160, 1
      %p164 = scmp.eq.s32.totalorder %s21, 1
      %p165 = scmp.ne.s32.totalorder %s160, %s162
      %p166 = scmp.eq.s32.totalorder %s21, 0
      %p167 = por %p165, %p166
      %p168 = scmp.ne.s32.totalorder %s160, %s162
      %p169 = scmp.eq.s32.totalorder %s26, 1
      %p170 = por %p168, %p169
      %p171 = scmp.ne.s32.totalorder %s162, %s163
      %p172 = scmp.eq.s32.totalorder %s26, 0
      %p173 = por %p171, %p172
      %p174 = scmp.ne.s32.totalorder %s162, %s163
      %p175 = scmp.eq.s32.totalorder %s27, 1
      %p176 = por %p174, %p175
      %p178 = scmp.ne.s32.totalorder %s163, %s177
      %p179 = scmp.eq.s32.totalorder %s27, 0
      %p180 = por %p178, %p179
      %s181 = ssub.s32 %s21, %s28
      %p182 = scmp.eq.s32.totalorder %s181, 0
      %s184 = sadd.s32 %s183, 1
      %s185 = scalar_select %p182, %s183, %s184
      %p188 = pneg %p182
      %p189 = scmp.eq.s32.totalorder %s21, 1
      %p190 = por %p188, %p189
      %p191 = scmp.ne.s32.totalorder %s183, %s186
      %p192 = scmp.eq.s32.totalorder %s21, 0
      %p193 = por %p191, %p192
      %p194 = scmp.ne.s32.totalorder %s183, %s186
      %p195 = scmp.eq.s32.totalorder %s26, 1
      %p196 = por %p194, %p195
      %p197 = scmp.ne.s32.totalorder %s186, %s187
      %p198 = scmp.eq.s32.totalorder %s26, 0
      %p199 = por %p197, %p198
      %p200 = scmp.ne.s32.totalorder %s186, %s187
      %p201 = scmp.eq.s32.totalorder %s27, 1
      %p202 = por %p200, %p201
      %p204 = scmp.ne.s32.totalorder %s187, %s203
      %p205 = scmp.eq.s32.totalorder %s27, 0
      %p206 = por %p204, %p205
      %p207 = scmp.le.s32.totalorder 1, %s21
      %p208 = scmp.lt.s32.totalorder %s21, 3
      %p209 = pnand %p207, %p208
      %p210 = pneg %p209
      // Predicated region
      $region9: #{tpu_custom_call.1} parent=5 // pred_check
        _
      $region10: #{tpu_custom_call.1} parent=5 // pred_check_branch
        %212 = sbr.rel (%p209) target = $region12
      $region11: #{tpu_custom_call.1} parent=5 // pred_region
        %s213 = ssub.s32 %s21, 1
        // Predicated region
        $region13: #{tpu_custom_call.1} parent=11 // pred_check
          %p214 = pneg %p68
        $region14: #{tpu_custom_call.1} parent=11 // pred_check_branch
          %216 = sbr.rel (%p214) target = $region16
        $region15: #{tpu_custom_call.1} parent=11 // pred_region
          %s218 = ssub.s32 512, 512
          %219 = vsyncadd [#allocation6], %s218
          %s220 = sshll.u32 [#allocation5], 4
          %s221 = int_to_ptr.vmem [resolvable:$true] %s220
          %226 = dma.hbm_to_vmem [thread:$0]  %s1, 512, %s221, [#allocation6], 128, 128, 8
        $region16: #{tpu_custom_call.1} parent=11 // pred_fallthru
          _
        // Predicated region
        $region17: #{tpu_custom_call.1} parent=11 // pred_check
          %p227 = pneg %p89
        $region18: #{tpu_custom_call.1} parent=11 // pred_check_branch
          %229 = sbr.rel (%p227) target = $region20
        $region19: #{tpu_custom_call.1} parent=11 // pred_region
          %s231 = ssub.s32 512, 512
          %232 = vsyncadd [#allocation6], %s231
          %s233 = sshll.u32 [#allocation7], 4
          %s234 = int_to_ptr.vmem [resolvable:$true] %s233
          %239 = dma.hbm_to_vmem [thread:$0]  %s2, 512, %s234, [#allocation6], 128, 128, 8
        $region20: #{tpu_custom_call.1} parent=11 // pred_fallthru
          _
        // Predicated region
        $region21: #{tpu_custom_call.1} parent=11 // pred_check
          %p240 = pneg %p110
        $region22: #{tpu_custom_call.1} parent=11 // pred_check_branch
          %242 = sbr.rel (%p240) target = $region24
        $region23: #{tpu_custom_call.1} parent=11 // pred_region
          %s244 = ssub.s32 512, 512
          %245 = vsyncadd [#allocation9], %s244
          %s246 = sshll.u32 [#allocation8], 4
          %s247 = int_to_ptr.vmem [resolvable:$true] %s246
          %252 = dma.hbm_to_vmem [thread:$0]  %s3, 512, %s247, [#allocation9], 128, 128, 8
        $region24: #{tpu_custom_call.1} parent=11 // pred_fallthru
          _
        // Predicated region
        $region25: #{tpu_custom_call.1} parent=11 // pred_check
          %p253 = pneg %p131
        $region26: #{tpu_custom_call.1} parent=11 // pred_check_branch
          %255 = sbr.rel (%p253) target = $region28
        $region27: #{tpu_custom_call.1} parent=11 // pred_region
          _
        $region28: #{tpu_custom_call.1} parent=11 // pred_fallthru
          _
        // Predicated region
        $region29: #{tpu_custom_call.1} parent=11 // pred_check
          %p256 = pneg %p152
        $region30: #{tpu_custom_call.1} parent=11 // pred_check_branch
          %258 = sbr.rel (%p256) target = $region32
        $region31: #{tpu_custom_call.1} parent=11 // pred_region
          _
        $region32: #{tpu_custom_call.1} parent=11 // pred_fallthru
          _
        // Predicated region
        $region33: #{tpu_custom_call.1} parent=11 // pred_check
          %p259 = pneg %p173
        $region34: #{tpu_custom_call.1} parent=11 // pred_check_branch
          %261 = sbr.rel (%p259) target = $region36
        $region35: #{tpu_custom_call.1} parent=11 // pred_region
          _
        $region36: #{tpu_custom_call.1} parent=11 // pred_fallthru
          _
      $region12: #{tpu_custom_call.1} parent=5 // pred_fallthru
        _
      %p262 = scmp.lt.s32.totalorder %s21, 2
      // Predicated region
      $region37: #{tpu_custom_call.1} parent=5 // pred_check
        %p263 = pneg %p262
      $region38: #{tpu_custom_call.1} parent=5 // pred_check_branch
        %265 = sbr.rel (%p263) target = $region40
      $region39: #{tpu_custom_call.1} parent=5 // pred_region
        // Predicated region
        $region41: #{tpu_custom_call.1} parent=39 // pred_check
          %p266 = pneg %p41
        $region42: #{tpu_custom_call.1} parent=39 // pred_check_branch
          %268 = sbr.rel (%p266) target = $region44
        $region43: #{tpu_custom_call.1} parent=39 // pred_region
          %s269 = sand.u32 %s31, 1
          %s270 = scalar_lea.sflag [#allocation3], %s269
          %s271 = sand.u32 %s31, 1
          %s272 = smul.addr %s271, 8
          %s273 = scalar_lea.vmem [#allocation2], %s272
          %s275 = ssub.s32 128, 128
          %276 = vsyncadd %s270, %s275
          %s277 = smul.addr %s21, 128
          %s278 = scalar_lea.hbm %s0, %s277
          %s280 = sshll.u32 %s273, 4
          %s281 = int_to_ptr.vmem [resolvable:$true] %s280
          %283 = dma.hbm_to_vmem [thread:$0]  %s278, 128, %s281, %s270
        $region44: #{tpu_custom_call.1} parent=39 // pred_fallthru
          _
      $region40: #{tpu_custom_call.1} parent=5 // pred_fallthru
        _
      %p284 = scmp.le.s32.totalorder 1, %s21
      %p285 = scmp.lt.s32.totalorder %s21, 3
      %p286 = pnand %p284, %p285
      %p287 = pneg %p286
      // Predicated region
      $region45: #{tpu_custom_call.1} parent=5 // pred_check
        _
      $region46: #{tpu_custom_call.1} parent=5 // pred_check_branch
        %289 = sbr.rel (%p286) target = $region48
      $region47: #{tpu_custom_call.1} parent=5 // pred_region
        %s290 = ssub.s32 %s21, 1
        %s291 = sand.u32 %s34, 1
        %s292 = scalar_lea.sflag [#allocation3], %s291
        %s293 = sand.u32 %s34, 1
        %s294 = smul.addr %s293, 8
        %s295 = scalar_lea.vmem [#allocation2], %s294
        // Predicated region
        $region49: #{tpu_custom_call.1} parent=47 // pred_check
          %p296 = pneg %p47
        $region50: #{tpu_custom_call.1} parent=47 // pred_check_branch
          %298 = sbr.rel (%p296) target = $region52
        $region51: #{tpu_custom_call.1} parent=47 // pred_region
          %299 = dma.done %s292, 128
        $region52: #{tpu_custom_call.1} parent=47 // pred_fallthru
          _
        // Predicated region
        $region53: #{tpu_custom_call.1} parent=47 // pred_check
          %p300 = pneg %p68
        $region54: #{tpu_custom_call.1} parent=47 // pred_check_branch
          %302 = sbr.rel (%p300) target = $region56
        $region55: #{tpu_custom_call.1} parent=47 // pred_region
          %303 = dma.done [#allocation6], 512
        $region56: #{tpu_custom_call.1} parent=47 // pred_fallthru
          _
        // Predicated region
        $region57: #{tpu_custom_call.1} parent=47 // pred_check
          %p304 = pneg %p89
        $region58: #{tpu_custom_call.1} parent=47 // pred_check_branch
          %306 = sbr.rel (%p304) target = $region60
        $region59: #{tpu_custom_call.1} parent=47 // pred_region
          %307 = dma.done [#allocation6], 512
        $region60: #{tpu_custom_call.1} parent=47 // pred_fallthru
          _
        // Predicated region
        $region61: #{tpu_custom_call.1} parent=47 // pred_check
          %p308 = pneg %p110
        $region62: #{tpu_custom_call.1} parent=47 // pred_check_branch
          %310 = sbr.rel (%p308) target = $region64
        $region63: #{tpu_custom_call.1} parent=47 // pred_region
          %311 = dma.done [#allocation9], 512
        $region64: #{tpu_custom_call.1} parent=47 // pred_fallthru
          _
        %s312 = sand.u32 %s34, 1
        %s313 = scalar_lea.sflag [#allocation3], %s312
        %s314 = sand.u32 %s34, 1
        %s315 = smul.addr %s314, 8
        %s316 = scalar_lea.vmem [#allocation2], %s315
        %p317 = pneg %p47
        %p318 = pneg %p44
        %p319 = pneg %p68
        %p320 = pneg %p65
        %p321 = pneg %p89
        %p322 = pneg %p86
        %p323 = pneg %p110
        %p324 = pneg %p107
        %p325 = pneg %p131
        %p326 = pneg %p128
        %p327 = pneg %p152
        %p328 = pneg %p149
        %p329 = pneg %p173
        %p330 = pneg %p170
        %p331 = pneg %p199
        %p332 = pneg %p196
        %s333 = sand.u32 %s186, 1
        %s334 = scalar_lea.sflag [#allocation4], %s333
        %s335 = sand.u32 %s186, 1
        %s336 = smul.addr %s335, 8
        %s337 = scalar_lea.vmem [#allocation10], %s336
        %v338 = vld [vmem:[%s295] sm:$0xff]
        %v339 = vld [vmem:[#allocation5] sm:$0xff]
        %v340 = vld [vmem:[#allocation5 + $0x8] sm:$0xff]
        %v341 = vld [vmem:[#allocation5 + $0x10] sm:$0xff]
        %v342 = vld [vmem:[#allocation5 + $0x18] sm:$0xff]
        %v343 = vld [vmem:[%s4] sm:$0x1]
        %v345 = vlaneseq
        %v346 = vshrl.u32 %v345, 7
        %v347 = vsub.s32 0, %v346
        %v348 = vrot.slane %v343, %v347
        %vm350 = vcmask 261120
        %v352 = vsel %vm350, %v338, 0
        %354 = vmatprep.subr.mxu0 0.0
        %355 = vmatpush1.msra.mxu0 %v339
        %356 = vmatprep.subr.mxu0 0.0
        %357 = vmatpush1.msra.mxu0 %v340
        %358 = vmatprep.subr.mxu0 0.0
        %359 = vmatpush1.msra.mxu0 %v341
        %360 = vmatprep.subr.mxu0 0.0
        %361 = vmatpush1.msra.mxu0 %v342
        %362 = vmatprep.subr.mxu0 0.0
        %363 = vmatpush1.msra.mxu0 0.0
        %364 = vmatprep.subr.mxu0 0.0
        %365 = vmatpush1.msra.mxu0 0.0
        %366 = vmatprep.subr.mxu0 0.0
        %367 = vmatpush1.msra.mxu0 0.0
        %368 = vmatprep.subr.mxu0 0.0
        %369 = vmatpush1.msra.mxu0 0.0
        %370 = vmatprep.subr.mxu0 0.0
        %371 = vmatpush1.msra.mxu0 0.0
        %372 = vmatprep.subr.mxu0 0.0
        %373 = vmatpush1.msra.mxu0 0.0
        %374 = vmatprep.subr.mxu0 0.0
        %375 = vmatpush1.msra.mxu0 0.0
        %376 = vmatprep.subr.mxu0 0.0
        %377 = vmatpush1.msra.mxu0 0.0
        %378 = vmatprep.subr.mxu0 0.0
        %379 = vmatpush1.msra.mxu0 0.0
        %380 = vmatprep.subr.mxu0 0.0
        %381 = vmatpush1.msra.mxu0 0.0
        %382 = vmatprep.subr.mxu0 0.0
        %383 = vmatpush1.msra.mxu0 0.0
        %384 = vmatprep.subr.mxu0 0.0
        %385 = vmatpush1.msra.mxu0 0.0
        %386 = vmatprep.subr.mxu0 0.0
        %387 = vmatpush1.msra.mxu0 0.0
        %388 = vmatprep.subr.mxu0 0.0
        %389 = vmatpush1.msra.mxu0 0.0
        %390 = vmatprep.subr.mxu0 0.0
        %391 = vmatpush1.msra.mxu0 0.0
        %392 = vmatprep.subr.mxu0 0.0
        %393 = vmatpush1.msra.mxu0 0.0
        %394 = vmatprep.subr.mxu0 0.0
        %395 = vmatpush1.msra.mxu0 0.0
        %396 = vmatprep.subr.mxu0 0.0
        %397 = vmatpush1.msra.mxu0 0.0
        %398 = vmatprep.subr.mxu0 0.0
        %399 = vmatpush1.msra.mxu0 0.0
        %400 = vmatprep.subr.mxu0 0.0
        %401 = vmatpush1.msra.mxu0 0.0
        %402 = vmatprep.subr.mxu0 0.0
        %403 = vmatpush1.msra.mxu0 0.0
        %404 = vmatprep.subr.mxu0 0.0
        %405 = vmatpush1.msra.mxu0 0.0
        %406 = vmatprep.subr.mxu0 0.0
        %407 = vmatpush1.msra.mxu0 0.0
        %408 = vmatprep.subr.mxu0 0.0
        %409 = vmatpush1.msra.mxu0 0.0
        %410 = vmatprep.subr.mxu0 0.0
        %411 = vmatpush1.msra.mxu0 0.0
        %412 = vmatprep.subr.mxu0 0.0
        %413 = vmatpush1.msra.mxu0 0.0
        %414 = vmatprep.subr.mxu0 0.0
        %415 = vmatpush1.msra.mxu0 0.0
        %416 = vmatprep.subr.mxu0 0.0
        %417 = vmatpush1.msra.mxu0 0.0
        %418 = vmatprep.mubr.f32.mxu0 0.0
        %419 = vmatmul.mubr.f32.gmra.mrb[0].mxu0 %v352
        %v420 = vpop.f32.mrb[0].mxu0
        %v421 = vadd.f32 %v348, %v420
        %v422 = vpop.f32.mrb[0].mxu0
        %423 = vdwg.mxu0
        %v424 = vld [vmem:[#allocation7] sm:$0xff]
        %v425 = vld [vmem:[#allocation7 + $0x8] sm:$0xff]
        %v426 = vld [vmem:[#allocation7 + $0x10] sm:$0xff]
        %v427 = vld [vmem:[#allocation7 + $0x18] sm:$0xff]
        %v428 = vld [vmem:[%s5] sm:$0x1]
        %v430 = vlaneseq
        %v431 = vshrl.u32 %v430, 7
        %v432 = vsub.s32 0, %v431
        %v433 = vrot.slane %v428, %v432
        %435 = vmatprep.subr.mxu0 0.0
        %436 = vmatpush1.msra.mxu0 %v424
        %437 = vmatprep.subr.mxu0 0.0
        %438 = vmatpush1.msra.mxu0 %v425
        %439 = vmatprep.subr.mxu0 0.0
        %440 = vmatpush1.msra.mxu0 %v426
        %441 = vmatprep.subr.mxu0 0.0
        %442 = vmatpush1.msra.mxu0 %v427
        %443 = vmatprep.subr.mxu0 0.0
        %444 = vmatpush1.msra.mxu0 0.0
        %445 = vmatprep.subr.mxu0 0.0
        %446 = vmatpush1.msra.mxu0 0.0
        %447 = vmatprep.subr.mxu0 0.0
        %448 = vmatpush1.msra.mxu0 0.0
        %449 = vmatprep.subr.mxu0 0.0
        %450 = vmatpush1.msra.mxu0 0.0
        %451 = vmatprep.subr.mxu0 0.0
        %452 = vmatpush1.msra.mxu0 0.0
        %453 = vmatprep.subr.mxu0 0.0
        %454 = vmatpush1.msra.mxu0 0.0
        %455 = vmatprep.subr.mxu0 0.0
        %456 = vmatpush1.msra.mxu0 0.0
        %457 = vmatprep.subr.mxu0 0.0
        %458 = vmatpush1.msra.mxu0 0.0
        %459 = vmatprep.subr.mxu0 0.0
        %460 = vmatpush1.msra.mxu0 0.0
        %461 = vmatprep.subr.mxu0 0.0
        %462 = vmatpush1.msra.mxu0 0.0
        %463 = vmatprep.subr.mxu0 0.0
        %464 = vmatpush1.msra.mxu0 0.0
        %465 = vmatprep.subr.mxu0 0.0
        %466 = vmatpush1.msra.mxu0 0.0
        %467 = vmatprep.subr.mxu0 0.0
        %468 = vmatpush1.msra.mxu0 0.0
        %469 = vmatprep.subr.mxu0 0.0
        %470 = vmatpush1.msra.mxu0 0.0
        %471 = vmatprep.subr.mxu0 0.0
        %472 = vmatpush1.msra.mxu0 0.0
        %473 = vmatprep.subr.mxu0 0.0
        %474 = vmatpush1.msra.mxu0 0.0
        %475 = vmatprep.subr.mxu0 0.0
        %476 = vmatpush1.msra.mxu0 0.0
        %477 = vmatprep.subr.mxu0 0.0
        %478 = vmatpush1.msra.mxu0 0.0
        %479 = vmatprep.subr.mxu0 0.0
        %480 = vmatpush1.msra.mxu0 0.0
        %481 = vmatprep.subr.mxu0 0.0
        %482 = vmatpush1.msra.mxu0 0.0
        %483 = vmatprep.subr.mxu0 0.0
        %484 = vmatpush1.msra.mxu0 0.0
        %485 = vmatprep.subr.mxu0 0.0
        %486 = vmatpush1.msra.mxu0 0.0
        %487 = vmatprep.subr.mxu0 0.0
        %488 = vmatpush1.msra.mxu0 0.0
        %489 = vmatprep.subr.mxu0 0.0
        %490 = vmatpush1.msra.mxu0 0.0
        %491 = vmatprep.subr.mxu0 0.0
        %492 = vmatpush1.msra.mxu0 0.0
        %493 = vmatprep.subr.mxu0 0.0
        %494 = vmatpush1.msra.mxu0 0.0
        %495 = vmatprep.subr.mxu0 0.0
        %496 = vmatpush1.msra.mxu0 0.0
        %497 = vmatprep.subr.mxu0 0.0
        %498 = vmatpush1.msra.mxu0 0.0
        %499 = vmatprep.mubr.f32.mxu0 0.0
        %500 = vmatmul.mubr.f32.gmra.mrb[0].mxu0 %v352
        %v501 = vpop.f32.mrb[0].mxu0
        %v502 = vadd.f32 %v433, %v501
        %v503 = vpop.f32.mrb[0].mxu0
        %504 = vdwg.mxu0
        %v505 = vld [vmem:[#allocation8] sm:$0xff]
        %v506 = vld [vmem:[#allocation8 + $0x8] sm:$0xff]
        %v507 = vld [vmem:[#allocation8 + $0x10] sm:$0xff]
        %v508 = vld [vmem:[#allocation8 + $0x18] sm:$0xff]
        %v509 = vld [vmem:[%s6] sm:$0x1]
        %v511 = vlaneseq
        %v512 = vshrl.u32 %v511, 7
        %v513 = vsub.s32 0, %v512
        %v514 = vrot.slane %v509, %v513
        %516 = vmatprep.subr.mxu0 0.0
        %517 = vmatpush1.msra.mxu0 %v505
        %518 = vmatprep.subr.mxu0 0.0
        %519 = vmatpush1.msra.mxu0 %v506
        %520 = vmatprep.subr.mxu0 0.0
        %521 = vmatpush1.msra.mxu0 %v507
        %522 = vmatprep.subr.mxu0 0.0
        %523 = vmatpush1.msra.mxu0 %v508
        %524 = vmatprep.subr.mxu0 0.0
        %525 = vmatpush1.msra.mxu0 0.0
        %526 = vmatprep.subr.mxu0 0.0
        %527 = vmatpush1.msra.mxu0 0.0
        %528 = vmatprep.subr.mxu0 0.0
        %529 = vmatpush1.msra.mxu0 0.0
        %530 = vmatprep.subr.mxu0 0.0
        %531 = vmatpush1.msra.mxu0 0.0
        %532 = vmatprep.subr.mxu0 0.0
        %533 = vmatpush1.msra.mxu0 0.0
        %534 = vmatprep.subr.mxu0 0.0
        %535 = vmatpush1.msra.mxu0 0.0
        %536 = vmatprep.subr.mxu0 0.0
        %537 = vmatpush1.msra.mxu0 0.0
        %538 = vmatprep.subr.mxu0 0.0
        %539 = vmatpush1.msra.mxu0 0.0
        %540 = vmatprep.subr.mxu0 0.0
        %541 = vmatpush1.msra.mxu0 0.0
        %542 = vmatprep.subr.mxu0 0.0
        %543 = vmatpush1.msra.mxu0 0.0
        %544 = vmatprep.subr.mxu0 0.0
        %545 = vmatpush1.msra.mxu0 0.0
        %546 = vmatprep.subr.mxu0 0.0
        %547 = vmatpush1.msra.mxu0 0.0
        %548 = vmatprep.subr.mxu0 0.0
        %549 = vmatpush1.msra.mxu0 0.0
        %550 = vmatprep.subr.mxu0 0.0
        %551 = vmatpush1.msra.mxu0 0.0
        %552 = vmatprep.subr.mxu0 0.0
        %553 = vmatpush1.msra.mxu0 0.0
        %554 = vmatprep.subr.mxu0 0.0
        %555 = vmatpush1.msra.mxu0 0.0
        %556 = vmatprep.subr.mxu0 0.0
        %557 = vmatpush1.msra.mxu0 0.0
        %558 = vmatprep.subr.mxu0 0.0
        %559 = vmatpush1.msra.mxu0 0.0
        %560 = vmatprep.subr.mxu0 0.0
        %561 = vmatpush1.msra.mxu0 0.0
        %562 = vmatprep.subr.mxu0 0.0
        %563 = vmatpush1.msra.mxu0 0.0
        %564 = vmatprep.subr.mxu0 0.0
        %565 = vmatpush1.msra.mxu0 0.0
        %566 = vmatprep.subr.mxu0 0.0
        %567 = vmatpush1.msra.mxu0 0.0
        %568 = vmatprep.subr.mxu0 0.0
        %569 = vmatpush1.msra.mxu0 0.0
        %570 = vmatprep.subr.mxu0 0.0
        %571 = vmatpush1.msra.mxu0 0.0
        %572 = vmatprep.subr.mxu0 0.0
        %573 = vmatpush1.msra.mxu0 0.0
        %574 = vmatprep.subr.mxu0 0.0
        %575 = vmatpush1.msra.mxu0 0.0
        %576 = vmatprep.subr.mxu0 0.0
        %577 = vmatpush1.msra.mxu0 0.0
        %578 = vmatprep.subr.mxu0 0.0
        %579 = vmatpush1.msra.mxu0 0.0
        %580 = vmatprep.mubr.f32.mxu0 0.0
        %581 = vmatmul.mubr.f32.gmra.mrb[0].mxu0 %v352
        %v582 = vpop.f32.mrb[0].mxu0
        %v583 = vadd.f32 %v514, %v582
        %v584 = vpop.f32.mrb[0].mxu0
        %585 = vdwg.mxu0
        %587 = vrot.lane.b32.xlu0 %v421, 120
        %v588 = vpop.permute.xlu0 %587
        %590 = vrot.lane.b32.xlu0 %v421, 112
        %v591 = vpop.permute.xlu0 %590
        %593 = vrot.lane.b32.xlu0 %v421, 104
        %v594 = vpop.permute.xlu0 %593
        %v596 = vcombine.low %v421, %v591
        %v597 = vcombine.high %v421, %v591
        %v599 = vunpack.c.l.s4 1983009808
        %v600 = vunpack.c.0.s8 %v599
        %v601 = vlaneseq
        %v602 = vshrl.u32 %v601, 7
        %v603 = vsub.s32 %v600, %v602
        %v604 = vrot.slane %v596, %v603
        %v606 = vunpack.c.l.s4 1983009808
        %v607 = vunpack.c.0.s8 %v606
        %v608 = vlaneseq
        %v609 = vshrl.u32 %v608, 7
        %v610 = vsub.s32 %v607, %v609
        %v611 = vrot.slane %v597, %v610
        %v612 = vcombine.low %v588, %v594
        %v613 = vcombine.high %v588, %v594
        %v615 = vunpack.c.l.s4 1983009808
        %v616 = vunpack.c.0.s8 %v615
        %v617 = vlaneseq
        %v618 = vshrl.u32 %v617, 7
        %v619 = vsub.s32 %v616, %v618
        %v620 = vrot.slane %v612, %v619
        %v622 = vunpack.c.l.s4 1983009808
        %v623 = vunpack.c.0.s8 %v622
        %v624 = vlaneseq
        %v625 = vshrl.u32 %v624, 7
        %v626 = vsub.s32 %v623, %v625
        %v627 = vrot.slane %v613, %v626
        %v628 = vcombine.low %v604, %v620
        %v629 = vcombine.high %v604, %v620
        %v631 = vunpack.c.l.s4 1934713408
        %v632 = vunpack.c.0.s8 %v631
        %v633 = vlaneseq
        %v634 = vshrl.u32 %v633, 7
        %v635 = vsub.s32 %v632, %v634
        %v636 = vrot.slane %v628, %v635
        %v638 = vunpack.c.l.s4 1934713408
        %v639 = vunpack.c.0.s8 %v638
        %v640 = vlaneseq
        %v641 = vshrl.u32 %v640, 7
        %v642 = vsub.s32 %v639, %v641
        %v643 = vrot.slane %v629, %v642
        %v644 = vcombine.low %v611, %v627
        %v645 = vcombine.high %v611, %v627
        %v647 = vunpack.c.l.s4 1934713408
        %v648 = vunpack.c.0.s8 %v647
        %v649 = vlaneseq
        %v650 = vshrl.u32 %v649, 7
        %v651 = vsub.s32 %v648, %v650
        %v652 = vrot.slane %v644, %v651
        %v654 = vunpack.c.l.s4 1934713408
        %v655 = vunpack.c.0.s8 %v654
        %v656 = vlaneseq
        %v657 = vshrl.u32 %v656, 7
        %v658 = vsub.s32 %v655, %v657
        %v659 = vrot.slane %v645, %v658
        %v660 = vcombine.high %v636, 0.0
        %v661 = vcombine.high %v643, 0.0
        %v662 = vcombine.high %v652, 0.0
        %v663 = vcombine.high %v659, 0.0
        %v664 = vcombine.low %v636, %v643
        %v666 = vunpack.c.l.s4 1983009808
        %v667 = vunpack.c.0.s8 %v666
        %v668 = vlaneseq
        %v669 = vshrl.u32 %v668, 7
        %v670 = vsub.s32 %v667, %v669
        %v671 = vrot.slane %v664, %v670
        %v672 = vcombine.low %v660, %v661
        %v674 = vunpack.c.l.s4 1983009808
        %v675 = vunpack.c.0.s8 %v674
        %v676 = vlaneseq
        %v677 = vshrl.u32 %v676, 7
        %v678 = vsub.s32 %v675, %v677
        %v679 = vrot.slane %v672, %v678
        %v680 = vcombine.low %v652, %v659
        %v682 = vunpack.c.l.s4 1983009808
        %v683 = vunpack.c.0.s8 %v682
        %v684 = vlaneseq
        %v685 = vshrl.u32 %v684, 7
        %v686 = vsub.s32 %v683, %v685
        %v687 = vrot.slane %v680, %v686
        %v688 = vcombine.low %v662, %v663
        %v690 = vunpack.c.l.s4 1983009808
        %v691 = vunpack.c.0.s8 %v690
        %v692 = vlaneseq
        %v693 = vshrl.u32 %v692, 7
        %v694 = vsub.s32 %v691, %v693
        %v695 = vrot.slane %v688, %v694
        %v696 = vcombine.low %v671, %v679
        %v697 = vcombine.high %v671, %v679
        %v699 = vunpack.c.l.s4 1934713408
        %v700 = vunpack.c.0.s8 %v699
        %v701 = vlaneseq
        %v702 = vshrl.u32 %v701, 7
        %v703 = vsub.s32 %v700, %v702
        %v704 = vrot.slane %v696, %v703
        %v706 = vunpack.c.l.s4 1934713408
        %v707 = vunpack.c.0.s8 %v706
        %v708 = vlaneseq
        %v709 = vshrl.u32 %v708, 7
        %v710 = vsub.s32 %v707, %v709
        %v711 = vrot.slane %v697, %v710
        %v712 = vcombine.low %v687, %v695
        %v713 = vcombine.high %v687, %v695
        %v715 = vunpack.c.l.s4 1934713408
        %v716 = vunpack.c.0.s8 %v715
        %v717 = vlaneseq
        %v718 = vshrl.u32 %v717, 7
        %v719 = vsub.s32 %v716, %v718
        %v720 = vrot.slane %v712, %v719
        %v722 = vunpack.c.l.s4 1934713408
        %v723 = vunpack.c.0.s8 %v722
        %v724 = vlaneseq
        %v725 = vshrl.u32 %v724, 7
        %v726 = vsub.s32 %v723, %v725
        %v727 = vrot.slane %v713, %v726
        %v728 = vcombine.low %v704, %v720
        %v729 = vcombine.high %v704, %v720
        %v730 = vcombine.low %v711, %v727
        %v731 = vcombine.high %v711, %v727
        %733 = vrot.lane.b32.xlu0 %v502, 120
        %v734 = vpop.permute.xlu0 %733
        %736 = vrot.lane.b32.xlu0 %v502, 112
        %v737 = vpop.permute.xlu0 %736
        %739 = vrot.lane.b32.xlu0 %v502, 104
        %v740 = vpop.permute.xlu0 %739
        %v742 = vcombine.low %v502, %v737
        %v743 = vcombine.high %v502, %v737
        %v745 = vunpack.c.l.s4 1983009808
        %v746 = vunpack.c.0.s8 %v745
        %v747 = vlaneseq
        %v748 = vshrl.u32 %v747, 7
        %v749 = vsub.s32 %v746, %v748
        %v750 = vrot.slane %v742, %v749
        %v752 = vunpack.c.l.s4 1983009808
        %v753 = vunpack.c.0.s8 %v752
        %v754 = vlaneseq
        %v755 = vshrl.u32 %v754, 7
        %v756 = vsub.s32 %v753, %v755
        %v757 = vrot.slane %v743, %v756
        %v758 = vcombine.low %v734, %v740
        %v759 = vcombine.high %v734, %v740
        %v761 = vunpack.c.l.s4 1983009808
        %v762 = vunpack.c.0.s8 %v761
        %v763 = vlaneseq
        %v764 = vshrl.u32 %v763, 7
        %v765 = vsub.s32 %v762, %v764
        %v766 = vrot.slane %v758, %v765
        %v768 = vunpack.c.l.s4 1983009808
        %v769 = vunpack.c.0.s8 %v768
        %v770 = vlaneseq
        %v771 = vshrl.u32 %v770, 7
        %v772 = vsub.s32 %v769, %v771
        %v773 = vrot.slane %v759, %v772
        %v774 = vcombine.low %v750, %v766
        %v775 = vcombine.high %v750, %v766
        %v777 = vunpack.c.l.s4 1934713408
        %v778 = vunpack.c.0.s8 %v777
        %v779 = vlaneseq
        %v780 = vshrl.u32 %v779, 7
        %v781 = vsub.s32 %v778, %v780
        %v782 = vrot.slane %v774, %v781
        %v784 = vunpack.c.l.s4 1934713408
        %v785 = vunpack.c.0.s8 %v784
        %v786 = vlaneseq
        %v787 = vshrl.u32 %v786, 7
        %v788 = vsub.s32 %v785, %v787
        %v789 = vrot.slane %v775, %v788
        %v790 = vcombine.low %v757, %v773
        %v791 = vcombine.high %v757, %v773
        %v793 = vunpack.c.l.s4 1934713408
        %v794 = vunpack.c.0.s8 %v793
        %v795 = vlaneseq
        %v796 = vshrl.u32 %v795, 7
        %v797 = vsub.s32 %v794, %v796
        %v798 = vrot.slane %v790, %v797
        %v800 = vunpack.c.l.s4 1934713408
        %v801 = vunpack.c.0.s8 %v800
        %v802 = vlaneseq
        %v803 = vshrl.u32 %v802, 7
        %v804 = vsub.s32 %v801, %v803
        %v805 = vrot.slane %v791, %v804
        %v806 = vcombine.high %v782, 0.0
        %v807 = vcombine.high %v789, 0.0
        %v808 = vcombine.high %v798, 0.0
        %v809 = vcombine.high %v805, 0.0
        %v810 = vcombine.low %v782, %v789
        %v812 = vunpack.c.l.s4 1983009808
        %v813 = vunpack.c.0.s8 %v812
        %v814 = vlaneseq
        %v815 = vshrl.u32 %v814, 7
        %v816 = vsub.s32 %v813, %v815
        %v817 = vrot.slane %v810, %v816
        %v818 = vcombine.low %v806, %v807
        %v820 = vunpack.c.l.s4 1983009808
        %v821 = vunpack.c.0.s8 %v820
        %v822 = vlaneseq
        %v823 = vshrl.u32 %v822, 7
        %v824 = vsub.s32 %v821, %v823
        %v825 = vrot.slane %v818, %v824
        %v826 = vcombine.low %v798, %v805
        %v828 = vunpack.c.l.s4 1983009808
        %v829 = vunpack.c.0.s8 %v828
        %v830 = vlaneseq
        %v831 = vshrl.u32 %v830, 7
        %v832 = vsub.s32 %v829, %v831
        %v833 = vrot.slane %v826, %v832
        %v834 = vcombine.low %v808, %v809
        %v836 = vunpack.c.l.s4 1983009808
        %v837 = vunpack.c.0.s8 %v836
        %v838 = vlaneseq
        %v839 = vshrl.u32 %v838, 7
        %v840 = vsub.s32 %v837, %v839
        %v841 = vrot.slane %v834, %v840
        %v842 = vcombine.low %v817, %v825
        %v843 = vcombine.high %v817, %v825
        %v845 = vunpack.c.l.s4 1934713408
        %v846 = vunpack.c.0.s8 %v845
        %v847 = vlaneseq
        %v848 = vshrl.u32 %v847, 7
        %v849 = vsub.s32 %v846, %v848
        %v850 = vrot.slane %v842, %v849
        %v852 = vunpack.c.l.s4 1934713408
        %v853 = vunpack.c.0.s8 %v852
        %v854 = vlaneseq
        %v855 = vshrl.u32 %v854, 7
        %v856 = vsub.s32 %v853, %v855
        %v857 = vrot.slane %v843, %v856
        %v858 = vcombine.low %v833, %v841
        %v859 = vcombine.high %v833, %v841
        %v861 = vunpack.c.l.s4 1934713408
        %v862 = vunpack.c.0.s8 %v861
        %v863 = vlaneseq
        %v864 = vshrl.u32 %v863, 7
        %v865 = vsub.s32 %v862, %v864
        %v866 = vrot.slane %v858, %v865
        %v868 = vunpack.c.l.s4 1934713408
        %v869 = vunpack.c.0.s8 %v868
        %v870 = vlaneseq
        %v871 = vshrl.u32 %v870, 7
        %v872 = vsub.s32 %v869, %v871
        %v873 = vrot.slane %v859, %v872
        %v874 = vcombine.low %v850, %v866
        %v875 = vcombine.high %v850, %v866
        %v876 = vcombine.low %v857, %v873
        %v877 = vcombine.high %v857, %v873
        %879 = vrot.lane.b32.xlu0 %v583, 120
        %v880 = vpop.permute.xlu0 %879
        %882 = vrot.lane.b32.xlu0 %v583, 112
        %v883 = vpop.permute.xlu0 %882
        %885 = vrot.lane.b32.xlu0 %v583, 104
        %v886 = vpop.permute.xlu0 %885
        %v888 = vcombine.low %v583, %v883
        %v889 = vcombine.high %v583, %v883
        %v891 = vunpack.c.l.s4 1983009808
        %v892 = vunpack.c.0.s8 %v891
        %v893 = vlaneseq
        %v894 = vshrl.u32 %v893, 7
        %v895 = vsub.s32 %v892, %v894
        %v896 = vrot.slane %v888, %v895
        %v898 = vunpack.c.l.s4 1983009808
        %v899 = vunpack.c.0.s8 %v898
        %v900 = vlaneseq
        %v901 = vshrl.u32 %v900, 7
        %v902 = vsub.s32 %v899, %v901
        %v903 = vrot.slane %v889, %v902
        %v904 = vcombine.low %v880, %v886
        %v905 = vcombine.high %v880, %v886
        %v907 = vunpack.c.l.s4 1983009808
        %v908 = vunpack.c.0.s8 %v907
        %v909 = vlaneseq
        %v910 = vshrl.u32 %v909, 7
        %v911 = vsub.s32 %v908, %v910
        %v912 = vrot.slane %v904, %v911
        %v914 = vunpack.c.l.s4 1983009808
        %v915 = vunpack.c.0.s8 %v914
        %v916 = vlaneseq
        %v917 = vshrl.u32 %v916, 7
        %v918 = vsub.s32 %v915, %v917
        %v919 = vrot.slane %v905, %v918
        %v920 = vcombine.low %v896, %v912
        %v921 = vcombine.high %v896, %v912
        %v923 = vunpack.c.l.s4 1934713408
        %v924 = vunpack.c.0.s8 %v923
        %v925 = vlaneseq
        %v926 = vshrl.u32 %v925, 7
        %v927 = vsub.s32 %v924, %v926
        %v928 = vrot.slane %v920, %v927
        %v930 = vunpack.c.l.s4 1934713408
        %v931 = vunpack.c.0.s8 %v930
        %v932 = vlaneseq
        %v933 = vshrl.u32 %v932, 7
        %v934 = vsub.s32 %v931, %v933
        %v935 = vrot.slane %v921, %v934
        %v936 = vcombine.low %v903, %v919
        %v937 = vcombine.high %v903, %v919
        %v939 = vunpack.c.l.s4 1934713408
        %v940 = vunpack.c.0.s8 %v939
        %v941 = vlaneseq
        %v942 = vshrl.u32 %v941, 7
        %v943 = vsub.s32 %v940, %v942
        %v944 = vrot.slane %v936, %v943
        %v946 = vunpack.c.l.s4 1934713408
        %v947 = vunpack.c.0.s8 %v946
        %v948 = vlaneseq
        %v949 = vshrl.u32 %v948, 7
        %v950 = vsub.s32 %v947, %v949
        %v951 = vrot.slane %v937, %v950
        %v952 = vcombine.high %v928, 0.0
        %v953 = vcombine.high %v935, 0.0
        %v954 = vcombine.high %v944, 0.0
        %v955 = vcombine.high %v951, 0.0
        %v956 = vcombine.low %v928, %v935
        %v958 = vunpack.c.l.s4 1983009808
        %v959 = vunpack.c.0.s8 %v958
        %v960 = vlaneseq
        %v961 = vshrl.u32 %v960, 7
        %v962 = vsub.s32 %v959, %v961
        %v963 = vrot.slane %v956, %v962
        %v964 = vcombine.low %v952, %v953
        %v966 = vunpack.c.l.s4 1983009808
        %v967 = vunpack.c.0.s8 %v966
        %v968 = vlaneseq
        %v969 = vshrl.u32 %v968, 7
        %v970 = vsub.s32 %v967, %v969
        %v971 = vrot.slane %v964, %v970
        %v972 = vcombine.low %v944, %v951
        %v974 = vunpack.c.l.s4 1983009808
        %v975 = vunpack.c.0.s8 %v974
        %v976 = vlaneseq
        %v977 = vshrl.u32 %v976, 7
        %v978 = vsub.s32 %v975, %v977
        %v979 = vrot.slane %v972, %v978
        %v980 = vcombine.low %v954, %v955
        %v982 = vunpack.c.l.s4 1983009808
        %v983 = vunpack.c.0.s8 %v982
        %v984 = vlaneseq
        %v985 = vshrl.u32 %v984, 7
        %v986 = vsub.s32 %v983, %v985
        %v987 = vrot.slane %v980, %v986
        %v988 = vcombine.low %v963, %v971
        %v989 = vcombine.high %v963, %v971
        %v991 = vunpack.c.l.s4 1934713408
        %v992 = vunpack.c.0.s8 %v991
        %v993 = vlaneseq
        %v994 = vshrl.u32 %v993, 7
        %v995 = vsub.s32 %v992, %v994
        %v996 = vrot.slane %v988, %v995
        %v998 = vunpack.c.l.s4 1934713408
        %v999 = vunpack.c.0.s8 %v998
        %v1000 = vlaneseq
        %v1001 = vshrl.u32 %v1000, 7
        %v1002 = vsub.s32 %v999, %v1001
        %v1003 = vrot.slane %v989, %v1002
        %v1004 = vcombine.low %v979, %v987
        %v1005 = vcombine.high %v979, %v987
        %v1007 = vunpack.c.l.s4 1934713408
        %v1008 = vunpack.c.0.s8 %v1007
        %v1009 = vlaneseq
        %v1010 = vshrl.u32 %v1009, 7
        %v1011 = vsub.s32 %v1008, %v1010
        %v1012 = vrot.slane %v1004, %v1011
        %v1014 = vunpack.c.l.s4 1934713408
        %v1015 = vunpack.c.0.s8 %v1014
        %v1016 = vlaneseq
        %v1017 = vshrl.u32 %v1016, 7
        %v1018 = vsub.s32 %v1015, %v1017
        %v1019 = vrot.slane %v1005, %v1018
        %v1020 = vcombine.low %v996, %v1012
        %v1021 = vcombine.high %v996, %v1012
        %v1022 = vcombine.low %v1003, %v1019
        %v1023 = vcombine.high %v1003, %v1019
        %vm1024 = vcmask 64512
        %v1026 = vsel %vm1024, %v728, 0
        %v1029 = vsel %vm1024, %v874, 0
        %1031 = vmatprep.subr.mxu0 0.0
        %1032 = vmatpush1.xpose.msra.mxu0 %v1029
        %1033 = vmatprep.subr.mxu0 0.0
        %1034 = vmatpush1.xpose.msra.mxu0 0.0
        %1035 = vmatprep.subr.mxu0 0.0
        %1036 = vmatpush1.xpose.msra.mxu0 0.0
        %1037 = vmatprep.subr.mxu0 0.0
        %1038 = vmatpush1.xpose.msra.mxu0 0.0
        %1039 = vmatprep.subr.mxu0 0.0
        %1040 = vmatpush1.xpose.msra.mxu0 0.0
        %1041 = vmatprep.subr.mxu0 0.0
        %1042 = vmatpush1.xpose.msra.mxu0 0.0
        %1043 = vmatprep.subr.mxu0 0.0
        %1044 = vmatpush1.xpose.msra.mxu0 0.0
        %1045 = vmatprep.subr.mxu0 0.0
        %1046 = vmatpush1.xpose.msra.mxu0 0.0
        %1047 = vmatprep.subr.mxu0 0.0
        %1048 = vmatpush1.xpose.msra.mxu0 0.0
        %1049 = vmatprep.subr.mxu0 0.0
        %1050 = vmatpush1.xpose.msra.mxu0 0.0
        %1051 = vmatprep.subr.mxu0 0.0
        %1052 = vmatpush1.xpose.msra.mxu0 0.0
        %1053 = vmatprep.subr.mxu0 0.0
        %1054 = vmatpush1.xpose.msra.mxu0 0.0
        %1055 = vmatprep.subr.mxu0 0.0
        %1056 = vmatpush1.xpose.msra.mxu0 0.0
        %1057 = vmatprep.subr.mxu0 0.0
        %1058 = vmatpush1.xpose.msra.mxu0 0.0
        %1059 = vmatprep.subr.mxu0 0.0
        %1060 = vmatpush1.xpose.msra.mxu0 0.0
        %1061 = vmatprep.subr.mxu0 0.0
        %1062 = vmatpush1.xpose.msra.mxu0 0.0
        %1063 = vmatprep.subr.mxu0 0.0
        %1064 = vmatpush1.xpose.msra.mxu0 0.0
        %1065 = vmatprep.subr.mxu0 0.0
        %1066 = vmatpush1.xpose.msra.mxu0 0.0
        %1067 = vmatprep.subr.mxu0 0.0
        %1068 = vmatpush1.xpose.msra.mxu0 0.0
        %1069 = vmatprep.subr.mxu0 0.0
        %1070 = vmatpush1.xpose.msra.mxu0 0.0
        %1071 = vmatprep.subr.mxu0 0.0
        %1072 = vmatpush1.xpose.msra.mxu0 0.0
        %1073 = vmatprep.subr.mxu0 0.0
        %1074 = vmatpush1.xpose.msra.mxu0 0.0
        %1075 = vmatprep.subr.mxu0 0.0
        %1076 = vmatpush1.xpose.msra.mxu0 0.0
        %1077 = vmatprep.subr.mxu0 0.0
        %1078 = vmatpush1.xpose.msra.mxu0 0.0
        %1079 = vmatprep.subr.mxu0 0.0
        %1080 = vmatpush1.xpose.msra.mxu0 0.0
        %1081 = vmatprep.subr.mxu0 0.0
        %1082 = vmatpush1.xpose.msra.mxu0 0.0
        %1083 = vmatprep.subr.mxu0 0.0
        %1084 = vmatpush1.xpose.msra.mxu0 0.0
        %1085 = vmatprep.subr.mxu0 0.0
        %1086 = vmatpush1.xpose.msra.mxu0 0.0
        %1087 = vmatprep.subr.mxu0 0.0
        %1088 = vmatpush1.xpose.msra.mxu0 0.0
        %1089 = vmatprep.subr.mxu0 0.0
        %1090 = vmatpush1.xpose.msra.mxu0 0.0
        %1091 = vmatprep.subr.mxu0 0.0
        %1092 = vmatpush1.xpose.msra.mxu0 0.0
        %1093 = vmatprep.subr.mxu0 0.0
        %1094 = vmatpush1.xpose.msra.mxu0 0.0
        %1095 = vmatprep.mubr.f32.mxu0 0.0
        %1096 = vmatmul.mubr.f32.gmra.mrb[0].mxu0 %v1026
        %v1097 = vpop.f32.mrb[0].mxu0
        %v1098 = vadd.f32 0.0, %v1097
        %v1099 = vpop.f32.mrb[0].mxu0
        %1100 = vdwg.mxu0
        %v1102 = vsel %vm1024, %v729, 0
        %v1105 = vsel %vm1024, %v875, 0
        %1107 = vmatprep.subr.mxu0 0.0
        %1108 = vmatpush1.xpose.msra.mxu0 %v1105
        %1109 = vmatprep.subr.mxu0 0.0
        %1110 = vmatpush1.xpose.msra.mxu0 0.0
        %1111 = vmatprep.subr.mxu0 0.0
        %1112 = vmatpush1.xpose.msra.mxu0 0.0
        %1113 = vmatprep.subr.mxu0 0.0
        %1114 = vmatpush1.xpose.msra.mxu0 0.0
        %1115 = vmatprep.subr.mxu0 0.0
        %1116 = vmatpush1.xpose.msra.mxu0 0.0
        %1117 = vmatprep.subr.mxu0 0.0
        %1118 = vmatpush1.xpose.msra.mxu0 0.0
        %1119 = vmatprep.subr.mxu0 0.0
        %1120 = vmatpush1.xpose.msra.mxu0 0.0
        %1121 = vmatprep.subr.mxu0 0.0
        %1122 = vmatpush1.xpose.msra.mxu0 0.0
        %1123 = vmatprep.subr.mxu0 0.0
        %1124 = vmatpush1.xpose.msra.mxu0 0.0
        %1125 = vmatprep.subr.mxu0 0.0
        %1126 = vmatpush1.xpose.msra.mxu0 0.0
        %1127 = vmatprep.subr.mxu0 0.0
        %1128 = vmatpush1.xpose.msra.mxu0 0.0
        %1129 = vmatprep.subr.mxu0 0.0
        %1130 = vmatpush1.xpose.msra.mxu0 0.0
        %1131 = vmatprep.subr.mxu0 0.0
        %1132 = vmatpush1.xpose.msra.mxu0 0.0
        %1133 = vmatprep.subr.mxu0 0.0
        %1134 = vmatpush1.xpose.msra.mxu0 0.0
        %1135 = vmatprep.subr.mxu0 0.0
        %1136 = vmatpush1.xpose.msra.mxu0 0.0
        %1137 = vmatprep.subr.mxu0 0.0
        %1138 = vmatpush1.xpose.msra.mxu0 0.0
        %1139 = vmatprep.subr.mxu0 0.0
        %1140 = vmatpush1.xpose.msra.mxu0 0.0
        %1141 = vmatprep.subr.mxu0 0.0
        %1142 = vmatpush1.xpose.msra.mxu0 0.0
        %1143 = vmatprep.subr.mxu0 0.0
        %1144 = vmatpush1.xpose.msra.mxu0 0.0
        %1145 = vmatprep.subr.mxu0 0.0
        %1146 = vmatpush1.xpose.msra.mxu0 0.0
        %1147 = vmatprep.subr.mxu0 0.0
        %1148 = vmatpush1.xpose.msra.mxu0 0.0
        %1149 = vmatprep.subr.mxu0 0.0
        %1150 = vmatpush1.xpose.msra.mxu0 0.0
        %1151 = vmatprep.subr.mxu0 0.0
        %1152 = vmatpush1.xpose.msra.mxu0 0.0
        %1153 = vmatprep.subr.mxu0 0.0
        %1154 = vmatpush1.xpose.msra.mxu0 0.0
        %1155 = vmatprep.subr.mxu0 0.0
        %1156 = vmatpush1.xpose.msra.mxu0 0.0
        %1157 = vmatprep.subr.mxu0 0.0
        %1158 = vmatpush1.xpose.msra.mxu0 0.0
        %1159 = vmatprep.subr.mxu0 0.0
        %1160 = vmatpush1.xpose.msra.mxu0 0.0
        %1161 = vmatprep.subr.mxu0 0.0
        %1162 = vmatpush1.xpose.msra.mxu0 0.0
        %1163 = vmatprep.subr.mxu0 0.0
        %1164 = vmatpush1.xpose.msra.mxu0 0.0
        %1165 = vmatprep.subr.mxu0 0.0
        %1166 = vmatpush1.xpose.msra.mxu0 0.0
        %1167 = vmatprep.subr.mxu0 0.0
        %1168 = vmatpush1.xpose.msra.mxu0 0.0
        %1169 = vmatprep.subr.mxu0 0.0
        %1170 = vmatpush1.xpose.msra.mxu0 0.0
        %1171 = vmatprep.mubr.f32.mxu0 0.0
        %1172 = vmatmul.mubr.f32.gmra.mrb[0].mxu0 %v1102
        %v1173 = vpop.f32.mrb[0].mxu0
        %v1174 = vadd.f32 0.0, %v1173
        %v1175 = vpop.f32.mrb[0].mxu0
        %1176 = vdwg.mxu0
        %v1178 = vsel %vm1024, %v730, 0
        %v1181 = vsel %vm1024, %v876, 0
        %1183 = vmatprep.subr.mxu0 0.0
        %1184 = vmatpush1.xpose.msra.mxu0 %v1181
        %1185 = vmatprep.subr.mxu0 0.0
        %1186 = vmatpush1.xpose.msra.mxu0 0.0
        %1187 = vmatprep.subr.mxu0 0.0
        %1188 = vmatpush1.xpose.msra.mxu0 0.0
        %1189 = vmatprep.subr.mxu0 0.0
        %1190 = vmatpush1.xpose.msra.mxu0 0.0
        %1191 = vmatprep.subr.mxu0 0.0
        %1192 = vmatpush1.xpose.msra.mxu0 0.0
        %1193 = vmatprep.subr.mxu0 0.0
        %1194 = vmatpush1.xpose.msra.mxu0 0.0
        %1195 = vmatprep.subr.mxu0 0.0
        %1196 = vmatpush1.xpose.msra.mxu0 0.0
        %1197 = vmatprep.subr.mxu0 0.0
        %1198 = vmatpush1.xpose.msra.mxu0 0.0
        %1199 = vmatprep.subr.mxu0 0.0
        %1200 = vmatpush1.xpose.msra.mxu0 0.0
        %1201 = vmatprep.subr.mxu0 0.0
        %1202 = vmatpush1.xpose.msra.mxu0 0.0
        %1203 = vmatprep.subr.mxu0 0.0
        %1204 = vmatpush1.xpose.msra.mxu0 0.0
        %1205 = vmatprep.subr.mxu0 0.0
        %1206 = vmatpush1.xpose.msra.mxu0 0.0
        %1207 = vmatprep.subr.mxu0 0.0
        %1208 = vmatpush1.xpose.msra.mxu0 0.0
        %1209 = vmatprep.subr.mxu0 0.0
        %1210 = vmatpush1.xpose.msra.mxu0 0.0
        %1211 = vmatprep.subr.mxu0 0.0
        %1212 = vmatpush1.xpose.msra.mxu0 0.0
        %1213 = vmatprep.subr.mxu0 0.0
        %1214 = vmatpush1.xpose.msra.mxu0 0.0
        %1215 = vmatprep.subr.mxu0 0.0
        %1216 = vmatpush1.xpose.msra.mxu0 0.0
        %1217 = vmatprep.subr.mxu0 0.0
        %1218 = vmatpush1.xpose.msra.mxu0 0.0
        %1219 = vmatprep.subr.mxu0 0.0
        %1220 = vmatpush1.xpose.msra.mxu0 0.0
        %1221 = vmatprep.subr.mxu0 0.0
        %1222 = vmatpush1.xpose.msra.mxu0 0.0
        %1223 = vmatprep.subr.mxu0 0.0
        %1224 = vmatpush1.xpose.msra.mxu0 0.0
        %1225 = vmatprep.subr.mxu0 0.0
        %1226 = vmatpush1.xpose.msra.mxu0 0.0
        %1227 = vmatprep.subr.mxu0 0.0
        %1228 = vmatpush1.xpose.msra.mxu0 0.0
        %1229 = vmatprep.subr.mxu0 0.0
        %1230 = vmatpush1.xpose.msra.mxu0 0.0
        %1231 = vmatprep.subr.mxu0 0.0
        %1232 = vmatpush1.xpose.msra.mxu0 0.0
        %1233 = vmatprep.subr.mxu0 0.0
        %1234 = vmatpush1.xpose.msra.mxu0 0.0
        %1235 = vmatprep.subr.mxu0 0.0
        %1236 = vmatpush1.xpose.msra.mxu0 0.0
        %1237 = vmatprep.subr.mxu0 0.0
        %1238 = vmatpush1.xpose.msra.mxu0 0.0
        %1239 = vmatprep.subr.mxu0 0.0
        %1240 = vmatpush1.xpose.msra.mxu0 0.0
        %1241 = vmatprep.subr.mxu0 0.0
        %1242 = vmatpush1.xpose.msra.mxu0 0.0
        %1243 = vmatprep.subr.mxu0 0.0
        %1244 = vmatpush1.xpose.msra.mxu0 0.0
        %1245 = vmatprep.subr.mxu0 0.0
        %1246 = vmatpush1.xpose.msra.mxu0 0.0
        %1247 = vmatprep.mubr.f32.mxu0 0.0
        %1248 = vmatmul.mubr.f32.gmra.mrb[0].mxu0 %v1178
        %v1249 = vpop.f32.mrb[0].mxu0
        %v1250 = vadd.f32 0.0, %v1249
        %v1251 = vpop.f32.mrb[0].mxu0
        %1252 = vdwg.mxu0
        %v1254 = vsel %vm1024, %v731, 0
        %v1257 = vsel %vm1024, %v877, 0
        %1259 = vmatprep.subr.mxu0 0.0
        %1260 = vmatpush1.xpose.msra.mxu0 %v1257
        %1261 = vmatprep.subr.mxu0 0.0
        %1262 = vmatpush1.xpose.msra.mxu0 0.0
        %1263 = vmatprep.subr.mxu0 0.0
        %1264 = vmatpush1.xpose.msra.mxu0 0.0
        %1265 = vmatprep.subr.mxu0 0.0
        %1266 = vmatpush1.xpose.msra.mxu0 0.0
        %1267 = vmatprep.subr.mxu0 0.0
        %1268 = vmatpush1.xpose.msra.mxu0 0.0
        %1269 = vmatprep.subr.mxu0 0.0
        %1270 = vmatpush1.xpose.msra.mxu0 0.0
        %1271 = vmatprep.subr.mxu0 0.0
        %1272 = vmatpush1.xpose.msra.mxu0 0.0
        %1273 = vmatprep.subr.mxu0 0.0
        %1274 = vmatpush1.xpose.msra.mxu0 0.0
        %1275 = vmatprep.subr.mxu0 0.0
        %1276 = vmatpush1.xpose.msra.mxu0 0.0
        %1277 = vmatprep.subr.mxu0 0.0
        %1278 = vmatpush1.xpose.msra.mxu0 0.0
        %1279 = vmatprep.subr.mxu0 0.0
        %1280 = vmatpush1.xpose.msra.mxu0 0.0
        %1281 = vmatprep.subr.mxu0 0.0
        %1282 = vmatpush1.xpose.msra.mxu0 0.0
        %1283 = vmatprep.subr.mxu0 0.0
        %1284 = vmatpush1.xpose.msra.mxu0 0.0
        %1285 = vmatprep.subr.mxu0 0.0
        %1286 = vmatpush1.xpose.msra.mxu0 0.0
        %1287 = vmatprep.subr.mxu0 0.0
        %1288 = vmatpush1.xpose.msra.mxu0 0.0
        %1289 = vmatprep.subr.mxu0 0.0
        %1290 = vmatpush1.xpose.msra.mxu0 0.0
        %1291 = vmatprep.subr.mxu0 0.0
        %1292 = vmatpush1.xpose.msra.mxu0 0.0
        %1293 = vmatprep.subr.mxu0 0.0
        %1294 = vmatpush1.xpose.msra.mxu0 0.0
        %1295 = vmatprep.subr.mxu0 0.0
        %1296 = vmatpush1.xpose.msra.mxu0 0.0
        %1297 = vmatprep.subr.mxu0 0.0
        %1298 = vmatpush1.xpose.msra.mxu0 0.0
        %1299 = vmatprep.subr.mxu0 0.0
        %1300 = vmatpush1.xpose.msra.mxu0 0.0
        %1301 = vmatprep.subr.mxu0 0.0
        %1302 = vmatpush1.xpose.msra.mxu0 0.0
        %1303 = vmatprep.subr.mxu0 0.0
        %1304 = vmatpush1.xpose.msra.mxu0 0.0
        %1305 = vmatprep.subr.mxu0 0.0
        %1306 = vmatpush1.xpose.msra.mxu0 0.0
        %1307 = vmatprep.subr.mxu0 0.0
        %1308 = vmatpush1.xpose.msra.mxu0 0.0
        %1309 = vmatprep.subr.mxu0 0.0
        %1310 = vmatpush1.xpose.msra.mxu0 0.0
        %1311 = vmatprep.subr.mxu0 0.0
        %1312 = vmatpush1.xpose.msra.mxu0 0.0
        %1313 = vmatprep.subr.mxu0 0.0
        %1314 = vmatpush1.xpose.msra.mxu0 0.0
        %1315 = vmatprep.subr.mxu0 0.0
        %1316 = vmatpush1.xpose.msra.mxu0 0.0
        %1317 = vmatprep.subr.mxu0 0.0
        %1318 = vmatpush1.xpose.msra.mxu0 0.0
        %1319 = vmatprep.subr.mxu0 0.0
        %1320 = vmatpush1.xpose.msra.mxu0 0.0
        %1321 = vmatprep.subr.mxu0 0.0
        %1322 = vmatpush1.xpose.msra.mxu0 0.0
        %1323 = vmatprep.mubr.f32.mxu0 0.0
        %1324 = vmatmul.mubr.f32.gmra.mrb[0].mxu0 %v1254
        %v1325 = vpop.f32.mrb[0].mxu0
        %v1326 = vadd.f32 0.0, %v1325
        %v1327 = vpop.f32.mrb[0].mxu0
        %1328 = vdwg.mxu0
        %v1329 = vsel %vm1024, %v1098, -inf
        %1330 = vmax.xlane.f32.xlu0 %v1329
        %v1331 = vpop.xlane.xlu0 %1330
        %v1332 = vsel %vm1024, %v1174, -inf
        %1333 = vmax.xlane.f32.xlu0 %v1332
        %v1334 = vpop.xlane.xlu0 %1333
        %v1335 = vsel %vm1024, %v1250, -inf
        %1336 = vmax.xlane.f32.xlu0 %v1335
        %v1337 = vpop.xlane.xlu0 %1336
        %v1338 = vsel %vm1024, %v1326, -inf
        %1339 = vmax.xlane.f32.xlu0 %v1338
        %v1340 = vpop.xlane.xlu0 %1339
        %v1341 = vsub.f32 %v1098, %v1331
        %v1342 = vsub.f32 %v1174, %v1334
        %v1343 = vsub.f32 %v1250, %v1337
        %v1344 = vsub.f32 %v1326, %v1340
        %v1345 = vmul.f32 %v1341, 1.442695
        %v1346 = vpow.pop %v1345
        %v1347 = vmul.f32 %v1342, 1.442695
        %v1348 = vpow.pop %v1347
        %v1349 = vmul.f32 %v1343, 1.442695
        %v1350 = vpow.pop %v1349
        %v1351 = vmul.f32 %v1344, 1.442695
        %v1352 = vpow.pop %v1351
        %v1353 = vsel %vm1024, %v1346, 0.0
        %1354 = vadd.xlane.f32.xlu0 %v1353
        %v1355 = vpop.xlane.xlu0 %1354
        %v1356 = vsel %vm1024, %v1348, 0.0
        %1357 = vadd.xlane.f32.xlu0 %v1356
        %v1358 = vpop.xlane.xlu0 %1357
        %v1359 = vsel %vm1024, %v1350, 0.0
        %1360 = vadd.xlane.f32.xlu0 %v1359
        %v1361 = vpop.xlane.xlu0 %1360
        %v1362 = vsel %vm1024, %v1352, 0.0
        %1363 = vadd.xlane.f32.xlu0 %v1362
        %v1364 = vpop.xlane.xlu0 %1363
        %v1365 = vrcp.pop %v1355
        %v1366 = vmul.f32 %v1346, %v1365
        %v1367 = vrcp.pop %v1358
        %v1368 = vmul.f32 %v1348, %v1367
        %v1369 = vrcp.pop %v1361
        %v1370 = vmul.f32 %v1350, %v1369
        %v1371 = vrcp.pop %v1364
        %v1372 = vmul.f32 %v1352, %v1371
        %v1374 = vsel %vm1024, %v1366, 0
        %1376 = vmatprep.subr.mxu0 0.0
        %1377 = vmatpush1.msra.mxu0 %v1020
        %1378 = vmatprep.subr.mxu0 0.0
        %1379 = vmatpush1.msra.mxu0 0.0
        %1380 = vmatprep.subr.mxu0 0.0
        %1381 = vmatpush1.msra.mxu0 0.0
        %1382 = vmatprep.subr.mxu0 0.0
        %1383 = vmatpush1.msra.mxu0 0.0
        %1384 = vmatprep.subr.mxu0 0.0
        %1385 = vmatpush1.msra.mxu0 0.0
        %1386 = vmatprep.subr.mxu0 0.0
        %1387 = vmatpush1.msra.mxu0 0.0
        %1388 = vmatprep.subr.mxu0 0.0
        %1389 = vmatpush1.msra.mxu0 0.0
        %1390 = vmatprep.subr.mxu0 0.0
        %1391 = vmatpush1.msra.mxu0 0.0
        %1392 = vmatprep.subr.mxu0 0.0
        %1393 = vmatpush1.msra.mxu0 0.0
        %1394 = vmatprep.subr.mxu0 0.0
        %1395 = vmatpush1.msra.mxu0 0.0
        %1396 = vmatprep.subr.mxu0 0.0
        %1397 = vmatpush1.msra.mxu0 0.0
        %1398 = vmatprep.subr.mxu0 0.0
        %1399 = vmatpush1.msra.mxu0 0.0
        %1400 = vmatprep.subr.mxu0 0.0
        %1401 = vmatpush1.msra.mxu0 0.0
        %1402 = vmatprep.subr.mxu0 0.0
        %1403 = vmatpush1.msra.mxu0 0.0
        %1404 = vmatprep.subr.mxu0 0.0
        %1405 = vmatpush1.msra.mxu0 0.0
        %1406 = vmatprep.subr.mxu0 0.0
        %1407 = vmatpush1.msra.mxu0 0.0
        %1408 = vmatprep.subr.mxu0 0.0
        %1409 = vmatpush1.msra.mxu0 0.0
        %1410 = vmatprep.subr.mxu0 0.0
        %1411 = vmatpush1.msra.mxu0 0.0
        %1412 = vmatprep.subr.mxu0 0.0
        %1413 = vmatpush1.msra.mxu0 0.0
        %1414 = vmatprep.subr.mxu0 0.0
        %1415 = vmatpush1.msra.mxu0 0.0
        %1416 = vmatprep.subr.mxu0 0.0
        %1417 = vmatpush1.msra.mxu0 0.0
        %1418 = vmatprep.subr.mxu0 0.0
        %1419 = vmatpush1.msra.mxu0 0.0
        %1420 = vmatprep.subr.mxu0 0.0
        %1421 = vmatpush1.msra.mxu0 0.0
        %1422 = vmatprep.subr.mxu0 0.0
        %1423 = vmatpush1.msra.mxu0 0.0
        %1424 = vmatprep.subr.mxu0 0.0
        %1425 = vmatpush1.msra.mxu0 0.0
        %1426 = vmatprep.subr.mxu0 0.0
        %1427 = vmatpush1.msra.mxu0 0.0
        %1428 = vmatprep.subr.mxu0 0.0
        %1429 = vmatpush1.msra.mxu0 0.0
        %1430 = vmatprep.subr.mxu0 0.0
        %1431 = vmatpush1.msra.mxu0 0.0
        %1432 = vmatprep.subr.mxu0 0.0
        %1433 = vmatpush1.msra.mxu0 0.0
        %1434 = vmatprep.subr.mxu0 0.0
        %1435 = vmatpush1.msra.mxu0 0.0
        %1436 = vmatprep.subr.mxu0 0.0
        %1437 = vmatpush1.msra.mxu0 0.0
        %1438 = vmatprep.subr.mxu0 0.0
        %1439 = vmatpush1.msra.mxu0 0.0
        %1440 = vmatprep.mubr.f32.mxu0 0.0
        %1441 = vmatmul.mubr.f32.gmra.mrb[0].mxu0 %v1374
        %v1442 = vpop.f32.mrb[0].mxu0
        %v1443 = vadd.f32 0.0, %v1442
        %v1444 = vpop.f32.mrb[0].mxu0
        %1445 = vdwg.mxu0
        %v1447 = vsel %vm1024, %v1368, 0
        %1449 = vmatprep.subr.mxu0 0.0
        %1450 = vmatpush1.msra.mxu0 %v1021
        %1451 = vmatprep.subr.mxu0 0.0
        %1452 = vmatpush1.msra.mxu0 0.0
        %1453 = vmatprep.subr.mxu0 0.0
        %1454 = vmatpush1.msra.mxu0 0.0
        %1455 = vmatprep.subr.mxu0 0.0
        %1456 = vmatpush1.msra.mxu0 0.0
        %1457 = vmatprep.subr.mxu0 0.0
        %1458 = vmatpush1.msra.mxu0 0.0
        %1459 = vmatprep.subr.mxu0 0.0
        %1460 = vmatpush1.msra.mxu0 0.0
        %1461 = vmatprep.subr.mxu0 0.0
        %1462 = vmatpush1.msra.mxu0 0.0
        %1463 = vmatprep.subr.mxu0 0.0
        %1464 = vmatpush1.msra.mxu0 0.0
        %1465 = vmatprep.subr.mxu0 0.0
        %1466 = vmatpush1.msra.mxu0 0.0
        %1467 = vmatprep.subr.mxu0 0.0
        %1468 = vmatpush1.msra.mxu0 0.0
        %1469 = vmatprep.subr.mxu0 0.0
        %1470 = vmatpush1.msra.mxu0 0.0
        %1471 = vmatprep.subr.mxu0 0.0
        %1472 = vmatpush1.msra.mxu0 0.0
        %1473 = vmatprep.subr.mxu0 0.0
        %1474 = vmatpush1.msra.mxu0 0.0
        %1475 = vmatprep.subr.mxu0 0.0
        %1476 = vmatpush1.msra.mxu0 0.0
        %1477 = vmatprep.subr.mxu0 0.0
        %1478 = vmatpush1.msra.mxu0 0.0
        %1479 = vmatprep.subr.mxu0 0.0
        %1480 = vmatpush1.msra.mxu0 0.0
        %1481 = vmatprep.subr.mxu0 0.0
        %1482 = vmatpush1.msra.mxu0 0.0
        %1483 = vmatprep.subr.mxu0 0.0
        %1484 = vmatpush1.msra.mxu0 0.0
        %1485 = vmatprep.subr.mxu0 0.0
        %1486 = vmatpush1.msra.mxu0 0.0
        %1487 = vmatprep.subr.mxu0 0.0
        %1488 = vmatpush1.msra.mxu0 0.0
        %1489 = vmatprep.subr.mxu0 0.0
        %1490 = vmatpush1.msra.mxu0 0.0
        %1491 = vmatprep.subr.mxu0 0.0
        %1492 = vmatpush1.msra.mxu0 0.0
        %1493 = vmatprep.subr.mxu0 0.0
        %1494 = vmatpush1.msra.mxu0 0.0
        %1495 = vmatprep.subr.mxu0 0.0
        %1496 = vmatpush1.msra.mxu0 0.0
        %1497 = vmatprep.subr.mxu0 0.0
        %1498 = vmatpush1.msra.mxu0 0.0
        %1499 = vmatprep.subr.mxu0 0.0
        %1500 = vmatpush1.msra.mxu0 0.0
        %1501 = vmatprep.subr.mxu0 0.0
        %1502 = vmatpush1.msra.mxu0 0.0
        %1503 = vmatprep.subr.mxu0 0.0
        %1504 = vmatpush1.msra.mxu0 0.0
        %1505 = vmatprep.subr.mxu0 0.0
        %1506 = vmatpush1.msra.mxu0 0.0
        %1507 = vmatprep.subr.mxu0 0.0
        %1508 = vmatpush1.msra.mxu0 0.0
        %1509 = vmatprep.subr.mxu0 0.0
        %1510 = vmatpush1.msra.mxu0 0.0
        %1511 = vmatprep.subr.mxu0 0.0
        %1512 = vmatpush1.msra.mxu0 0.0
        %1513 = vmatprep.mubr.f32.mxu0 0.0
        %1514 = vmatmul.mubr.f32.gmra.mrb[0].mxu0 %v1447
        %v1515 = vpop.f32.mrb[0].mxu0
        %v1516 = vadd.f32 0.0, %v1515
        %v1517 = vpop.f32.mrb[0].mxu0
        %1518 = vdwg.mxu0
        %v1520 = vsel %vm1024, %v1370, 0
        %1522 = vmatprep.subr.mxu0 0.0
        %1523 = vmatpush1.msra.mxu0 %v1022
        %1524 = vmatprep.subr.mxu0 0.0
        %1525 = vmatpush1.msra.mxu0 0.0
        %1526 = vmatprep.subr.mxu0 0.0
        %1527 = vmatpush1.msra.mxu0 0.0
        %1528 = vmatprep.subr.mxu0 0.0
        %1529 = vmatpush1.msra.mxu0 0.0
        %1530 = vmatprep.subr.mxu0 0.0
        %1531 = vmatpush1.msra.mxu0 0.0
        %1532 = vmatprep.subr.mxu0 0.0
        %1533 = vmatpush1.msra.mxu0 0.0
        %1534 = vmatprep.subr.mxu0 0.0
        %1535 = vmatpush1.msra.mxu0 0.0
        %1536 = vmatprep.subr.mxu0 0.0
        %1537 = vmatpush1.msra.mxu0 0.0
        %1538 = vmatprep.subr.mxu0 0.0
        %1539 = vmatpush1.msra.mxu0 0.0
        %1540 = vmatprep.subr.mxu0 0.0
        %1541 = vmatpush1.msra.mxu0 0.0
        %1542 = vmatprep.subr.mxu0 0.0
        %1543 = vmatpush1.msra.mxu0 0.0
        %1544 = vmatprep.subr.mxu0 0.0
        %1545 = vmatpush1.msra.mxu0 0.0
        %1546 = vmatprep.subr.mxu0 0.0
        %1547 = vmatpush1.msra.mxu0 0.0
        %1548 = vmatprep.subr.mxu0 0.0
        %1549 = vmatpush1.msra.mxu0 0.0
        %1550 = vmatprep.subr.mxu0 0.0
        %1551 = vmatpush1.msra.mxu0 0.0
        %1552 = vmatprep.subr.mxu0 0.0
        %1553 = vmatpush1.msra.mxu0 0.0
        %1554 = vmatprep.subr.mxu0 0.0
        %1555 = vmatpush1.msra.mxu0 0.0
        %1556 = vmatprep.subr.mxu0 0.0
        %1557 = vmatpush1.msra.mxu0 0.0
        %1558 = vmatprep.subr.mxu0 0.0
        %1559 = vmatpush1.msra.mxu0 0.0
        %1560 = vmatprep.subr.mxu0 0.0
        %1561 = vmatpush1.msra.mxu0 0.0
        %1562 = vmatprep.subr.mxu0 0.0
        %1563 = vmatpush1.msra.mxu0 0.0
        %1564 = vmatprep.subr.mxu0 0.0
        %1565 = vmatpush1.msra.mxu0 0.0
        %1566 = vmatprep.subr.mxu0 0.0
        %1567 = vmatpush1.msra.mxu0 0.0
        %1568 = vmatprep.subr.mxu0 0.0
        %1569 = vmatpush1.msra.mxu0 0.0
        %1570 = vmatprep.subr.mxu0 0.0
        %1571 = vmatpush1.msra.mxu0 0.0
        %1572 = vmatprep.subr.mxu0 0.0
        %1573 = vmatpush1.msra.mxu0 0.0
        %1574 = vmatprep.subr.mxu0 0.0
        %1575 = vmatpush1.msra.mxu0 0.0
        %1576 = vmatprep.subr.mxu0 0.0
        %1577 = vmatpush1.msra.mxu0 0.0
        %1578 = vmatprep.subr.mxu0 0.0
        %1579 = vmatpush1.msra.mxu0 0.0
        %1580 = vmatprep.subr.mxu0 0.0
        %1581 = vmatpush1.msra.mxu0 0.0
        %1582 = vmatprep.subr.mxu0 0.0
        %1583 = vmatpush1.msra.mxu0 0.0
        %1584 = vmatprep.subr.mxu0 0.0
        %1585 = vmatpush1.msra.mxu0 0.0
        %1586 = vmatprep.mubr.f32.mxu0 0.0
        %1587 = vmatmul.mubr.f32.gmra.mrb[0].mxu0 %v1520
        %v1588 = vpop.f32.mrb[0].mxu0
        %v1589 = vadd.f32 0.0, %v1588
        %v1590 = vpop.f32.mrb[0].mxu0
        %1591 = vdwg.mxu0
        %v1593 = vsel %vm1024, %v1372, 0
        %1595 = vmatprep.subr.mxu0 0.0
        %1596 = vmatpush1.msra.mxu0 %v1023
        %1597 = vmatprep.subr.mxu0 0.0
        %1598 = vmatpush1.msra.mxu0 0.0
        %1599 = vmatprep.subr.mxu0 0.0
        %1600 = vmatpush1.msra.mxu0 0.0
        %1601 = vmatprep.subr.mxu0 0.0
        %1602 = vmatpush1.msra.mxu0 0.0
        %1603 = vmatprep.subr.mxu0 0.0
        %1604 = vmatpush1.msra.mxu0 0.0
        %1605 = vmatprep.subr.mxu0 0.0
        %1606 = vmatpush1.msra.mxu0 0.0
        %1607 = vmatprep.subr.mxu0 0.0
        %1608 = vmatpush1.msra.mxu0 0.0
        %1609 = vmatprep.subr.mxu0 0.0
        %1610 = vmatpush1.msra.mxu0 0.0
        %1611 = vmatprep.subr.mxu0 0.0
        %1612 = vmatpush1.msra.mxu0 0.0
        %1613 = vmatprep.subr.mxu0 0.0
        %1614 = vmatpush1.msra.mxu0 0.0
        %1615 = vmatprep.subr.mxu0 0.0
        %1616 = vmatpush1.msra.mxu0 0.0
        %1617 = vmatprep.subr.mxu0 0.0
        %1618 = vmatpush1.msra.mxu0 0.0
        %1619 = vmatprep.subr.mxu0 0.0
        %1620 = vmatpush1.msra.mxu0 0.0
        %1621 = vmatprep.subr.mxu0 0.0
        %1622 = vmatpush1.msra.mxu0 0.0
        %1623 = vmatprep.subr.mxu0 0.0
        %1624 = vmatpush1.msra.mxu0 0.0
        %1625 = vmatprep.subr.mxu0 0.0
        %1626 = vmatpush1.msra.mxu0 0.0
        %1627 = vmatprep.subr.mxu0 0.0
        %1628 = vmatpush1.msra.mxu0 0.0
        %1629 = vmatprep.subr.mxu0 0.0
        %1630 = vmatpush1.msra.mxu0 0.0
        %1631 = vmatprep.subr.mxu0 0.0
        %1632 = vmatpush1.msra.mxu0 0.0
        %1633 = vmatprep.subr.mxu0 0.0
        %1634 = vmatpush1.msra.mxu0 0.0
        %1635 = vmatprep.subr.mxu0 0.0
        %1636 = vmatpush1.msra.mxu0 0.0
        %1637 = vmatprep.subr.mxu0 0.0
        %1638 = vmatpush1.msra.mxu0 0.0
        %1639 = vmatprep.subr.mxu0 0.0
        %1640 = vmatpush1.msra.mxu0 0.0
        %1641 = vmatprep.subr.mxu0 0.0
        %1642 = vmatpush1.msra.mxu0 0.0
        %1643 = vmatprep.subr.mxu0 0.0
        %1644 = vmatpush1.msra.mxu0 0.0
        %1645 = vmatprep.subr.mxu0 0.0
        %1646 = vmatpush1.msra.mxu0 0.0
        %1647 = vmatprep.subr.mxu0 0.0
        %1648 = vmatpush1.msra.mxu0 0.0
        %1649 = vmatprep.subr.mxu0 0.0
        %1650 = vmatpush1.msra.mxu0 0.0
        %1651 = vmatprep.subr.mxu0 0.0
        %1652 = vmatpush1.msra.mxu0 0.0
        %1653 = vmatprep.subr.mxu0 0.0
        %1654 = vmatpush1.msra.mxu0 0.0
        %1655 = vmatprep.subr.mxu0 0.0
        %1656 = vmatpush1.msra.mxu0 0.0
        %1657 = vmatprep.subr.mxu0 0.0
        %1658 = vmatpush1.msra.mxu0 0.0
        %1659 = vmatprep.mubr.f32.mxu0 0.0
        %1660 = vmatmul.mubr.f32.gmra.mrb[0].mxu0 %v1593
        %v1661 = vpop.f32.mrb[0].mxu0
        %v1662 = vadd.f32 0.0, %v1661
        %v1663 = vpop.f32.mrb[0].mxu0
        %1664 = vdwg.mxu0
        %v1665 = vcombine.low %v1443, %v1589
        %v1666 = vcombine.high %v1443, %v1589
        %v1668 = vunpack.c.l.s4 1983009808
        %v1669 = vunpack.c.0.s8 %v1668
        %v1670 = vlaneseq
        %v1671 = vshrl.u32 %v1670, 7
        %v1672 = vsub.s32 %v1669, %v1671
        %v1673 = vrot.slane %v1665, %v1672
        %v1675 = vunpack.c.l.s4 1983009808
        %v1676 = vunpack.c.0.s8 %v1675
        %v1677 = vlaneseq
        %v1678 = vshrl.u32 %v1677, 7
        %v1679 = vsub.s32 %v1676, %v1678
        %v1680 = vrot.slane %v1666, %v1679
        %v1681 = vcombine.low %v1516, %v1662
        %v1682 = vcombine.high %v1516, %v1662
        %v1684 = vunpack.c.l.s4 1983009808
        %v1685 = vunpack.c.0.s8 %v1684
        %v1686 = vlaneseq
        %v1687 = vshrl.u32 %v1686, 7
        %v1688 = vsub.s32 %v1685, %v1687
        %v1689 = vrot.slane %v1681, %v1688
        %v1691 = vunpack.c.l.s4 1983009808
        %v1692 = vunpack.c.0.s8 %v1691
        %v1693 = vlaneseq
        %v1694 = vshrl.u32 %v1693, 7
        %v1695 = vsub.s32 %v1692, %v1694
        %v1696 = vrot.slane %v1682, %v1695
        %v1697 = vcombine.low %v1673, %v1689
        %v1698 = vcombine.high %v1673, %v1689
        %v1700 = vunpack.c.l.s4 1934713408
        %v1701 = vunpack.c.0.s8 %v1700
        %v1702 = vlaneseq
        %v1703 = vshrl.u32 %v1702, 7
        %v1704 = vsub.s32 %v1701, %v1703
        %v1705 = vrot.slane %v1697, %v1704
        %v1707 = vunpack.c.l.s4 1934713408
        %v1708 = vunpack.c.0.s8 %v1707
        %v1709 = vlaneseq
        %v1710 = vshrl.u32 %v1709, 7
        %v1711 = vsub.s32 %v1708, %v1710
        %v1712 = vrot.slane %v1698, %v1711
        %v1713 = vcombine.low %v1680, %v1696
        %v1714 = vcombine.high %v1680, %v1696
        %v1716 = vunpack.c.l.s4 1934713408
        %v1717 = vunpack.c.0.s8 %v1716
        %v1718 = vlaneseq
        %v1719 = vshrl.u32 %v1718, 7
        %v1720 = vsub.s32 %v1717, %v1719
        %v1721 = vrot.slane %v1713, %v1720
        %v1723 = vunpack.c.l.s4 1934713408
        %v1724 = vunpack.c.0.s8 %v1723
        %v1725 = vlaneseq
        %v1726 = vshrl.u32 %v1725, 7
        %v1727 = vsub.s32 %v1724, %v1726
        %v1728 = vrot.slane %v1714, %v1727
        %v1729 = vcombine.high %v1705, 0.0
        %v1730 = vcombine.high %v1712, 0.0
        %v1731 = vcombine.high %v1721, 0.0
        %v1732 = vcombine.high %v1728, 0.0
        %v1733 = vcombine.low %v1705, %v1712
        %v1735 = vunpack.c.l.s4 1983009808
        %v1736 = vunpack.c.0.s8 %v1735
        %v1737 = vlaneseq
        %v1738 = vshrl.u32 %v1737, 7
        %v1739 = vsub.s32 %v1736, %v1738
        %v1740 = vrot.slane %v1733, %v1739
        %v1741 = vcombine.low %v1729, %v1730
        %v1743 = vunpack.c.l.s4 1983009808
        %v1744 = vunpack.c.0.s8 %v1743
        %v1745 = vlaneseq
        %v1746 = vshrl.u32 %v1745, 7
        %v1747 = vsub.s32 %v1744, %v1746
        %v1748 = vrot.slane %v1741, %v1747
        %v1749 = vcombine.low %v1721, %v1728
        %v1751 = vunpack.c.l.s4 1983009808
        %v1752 = vunpack.c.0.s8 %v1751
        %v1753 = vlaneseq
        %v1754 = vshrl.u32 %v1753, 7
        %v1755 = vsub.s32 %v1752, %v1754
        %v1756 = vrot.slane %v1749, %v1755
        %v1757 = vcombine.low %v1731, %v1732
        %v1759 = vunpack.c.l.s4 1983009808
        %v1760 = vunpack.c.0.s8 %v1759
        %v1761 = vlaneseq
        %v1762 = vshrl.u32 %v1761, 7
        %v1763 = vsub.s32 %v1760, %v1762
        %v1764 = vrot.slane %v1757, %v1763
        %v1765 = vcombine.low %v1740, %v1748
        %v1766 = vcombine.high %v1740, %v1748
        %v1768 = vunpack.c.l.s4 1934713408
        %v1769 = vunpack.c.0.s8 %v1768
        %v1770 = vlaneseq
        %v1771 = vshrl.u32 %v1770, 7
        %v1772 = vsub.s32 %v1769, %v1771
        %v1773 = vrot.slane %v1765, %v1772
        %v1775 = vunpack.c.l.s4 1934713408
        %v1776 = vunpack.c.0.s8 %v1775
        %v1777 = vlaneseq
        %v1778 = vshrl.u32 %v1777, 7
        %v1779 = vsub.s32 %v1776, %v1778
        %v1780 = vrot.slane %v1766, %v1779
        %v1781 = vcombine.low %v1756, %v1764
        %v1782 = vcombine.high %v1756, %v1764
        %v1784 = vunpack.c.l.s4 1934713408
        %v1785 = vunpack.c.0.s8 %v1784
        %v1786 = vlaneseq
        %v1787 = vshrl.u32 %v1786, 7
        %v1788 = vsub.s32 %v1785, %v1787
        %v1789 = vrot.slane %v1781, %v1788
        %v1791 = vunpack.c.l.s4 1934713408
        %v1792 = vunpack.c.0.s8 %v1791
        %v1793 = vlaneseq
        %v1794 = vshrl.u32 %v1793, 7
        %v1795 = vsub.s32 %v1792, %v1794
        %v1796 = vrot.slane %v1782, %v1795
        %v1797 = vcombine.low %v1773, %v1789
        %v1798 = vcombine.high %v1773, %v1789
        %v1799 = vcombine.low %v1780, %v1796
        %v1800 = vcombine.high %v1780, %v1796
        %1802 = vrot.lane.b32.xlu0 %v1798, 8
        %v1803 = vpop.permute.xlu0 %1802
        %1806 = vrot.lane.b32.xlu0 %v1799, 16
        %v1807 = vpop.permute.xlu0 %1806
        %1810 = vrot.lane.b32.xlu0 %v1800, 24
        %v1811 = vpop.permute.xlu0 %1810
        %v1813 = vsel %vm1024, %v1797, %v1803
        %vm1814 = vcmask 130048
        %v1815 = vsel %vm1814, %v1813, %v1807
        %vm1816 = vcmask 195584
        %v1817 = vsel %vm1816, %v1815, %v1811
        %v1818 = vtanh.pop %v1817
        %1819 = vst.msk [vmem:[%s337] sm:$0xff] %vm350, %v1818
        %s1820 = sand.u32 %s186, 1
        %s1821 = scalar_lea.sflag [#allocation4], %s1820
        %s1822 = sand.u32 %s186, 1
        %s1823 = smul.addr %s1822, 8
        %s1824 = scalar_lea.vmem [#allocation10], %s1823
        // Predicated region
        $region65: #{tpu_custom_call.1} parent=47 // pred_check
          %p1825 = pneg %p196
        $region66: #{tpu_custom_call.1} parent=47 // pred_check_branch
          %1827 = sbr.rel (%p1825) target = $region68
        $region67: #{tpu_custom_call.1} parent=47 // pred_region
          %s1829 = ssub.s32 128, 128
          %1830 = vsyncadd %s1821, %s1829
          %s1831 = smul.addr %s26, 128
          %s1832 = scalar_lea.hbm %s7, %s1831
          %s1834 = sshll.u32 %s1824, 4
          %s1835 = int_to_ptr.vmem [resolvable:$true] %s1834
          %1837 = dma.vmem_to_hbm [thread:$0]  %s1835, 128, %s1832, %s1821
        $region68: #{tpu_custom_call.1} parent=47 // pred_fallthru
          _
      $region48: #{tpu_custom_call.1} parent=5 // pred_fallthru
        _
      %p1838 = scmp.le.s32.totalorder 2, %s21
      // Predicated region
      $region69: #{tpu_custom_call.1} parent=5 // pred_check
        %p1839 = pneg %p1838
      $region70: #{tpu_custom_call.1} parent=5 // pred_check_branch
        %1841 = sbr.rel (%p1839) target = $region72
      $region71: #{tpu_custom_call.1} parent=5 // pred_region
        %s1842 = ssub.s32 %s21, 2
        // Predicated region
        $region73: #{tpu_custom_call.1} parent=71 // pred_check
          %p1843 = pneg %p202
        $region74: #{tpu_custom_call.1} parent=71 // pred_check_branch
          %1845 = sbr.rel (%p1843) target = $region76
        $region75: #{tpu_custom_call.1} parent=71 // pred_region
          %s1846 = sand.u32 %s187, 1
          %s1847 = scalar_lea.sflag [#allocation4], %s1846
          %s1848 = sand.u32 %s187, 1
          %s1849 = smul.addr %s1848, 8
          %s1850 = scalar_lea.vmem [#allocation10], %s1849
          %1851 = dma.done %s1847, 128
        $region76: #{tpu_custom_call.1} parent=71 // pred_fallthru
          _
      $region72: #{tpu_custom_call.1} parent=5 // pred_fallthru
        _
    $region6: #{tpu_custom_call.1} parent=1 // loop_footer
      %s25 = sadd.s32 1, %s21
    $region7: #{tpu_custom_call.1} parent=1 // loop_footer_branch
      %20 = sbr.rel target = $region3
    $region8: #{tpu_custom_call.1} parent=1 // loop_exit
      _
    %1852 = vsyncpa [#allocation3], 1
    %s1853 = scalar_lea.sflag [#allocation3], 1
    %1854 = vsyncpa %s1853, 1
    %1855 = vsyncpa [#allocation6], 1
    %1856 = vsyncpa [#allocation9], 1
    %1857 = vsyncpa [#allocation4], 1
    %s1858 = scalar_lea.sflag [#allocation4], 1
    %1859 = vsyncpa %s1858, 1

</llo_original>
